<compile_context>
chip_gen: v5e
topology: v5e:2x2
jax: 0.10.0
libtpu: 0.0.40
codegen_flags: <defaults>
</compile_context>

<pallas_src>
import functools

import jax
import jax.numpy as jnp
from jax.experimental import pallas as pl
from jax.experimental.pallas import tpu as pltpu

HIDDEN = 256
TILE_B = 128      # batch rows per grid step
OUT_LANES = 128   # lane-dense output slab; n_actions is sliced in the wrapper


def _mlp_kernel(x_ref,
                w1_ref, b1_ref,
                w2_ref, b2_ref,
                w3_ref, b3_ref,
                w4_ref, b4_ref,
                w5_ref, b5_ref,
                o_ref):
    # Weights are bf16 and VMEM-resident across all grid steps (constant
    # index_map); only the x / o tiles change per step.
    h = x_ref[...].astype(jnp.bfloat16)

    h = jnp.dot(h, w1_ref[...], preferred_element_type=jnp.float32) + b1_ref[...]
    h = jnp.maximum(h, 0.0).astype(jnp.bfloat16)

    h = jnp.dot(h, w2_ref[...], preferred_element_type=jnp.float32) + b2_ref[...]
    h = jnp.maximum(h, 0.0).astype(jnp.bfloat16)

    h = jnp.dot(h, w3_ref[...], preferred_element_type=jnp.float32) + b3_ref[...]
    h = jnp.maximum(h, 0.0).astype(jnp.bfloat16)

    h = jnp.dot(h, w4_ref[...], preferred_element_type=jnp.float32) + b4_ref[...]
    h = jnp.maximum(h, 0.0).astype(jnp.bfloat16)

    out = jnp.dot(h, w5_ref[...], preferred_element_type=jnp.float32) + b5_ref[...]
    o_ref[...] = out  # (TILE_B, OUT_LANES) f32, lane-dense unmasked store


def prepare_kernel_params(params):
    """One-time prep: PyTorch (out,in) f32 weights -> (in,out) bf16, biases ->
    (1,out) f32; final layer padded to OUT_LANES lanes.  Cache the result and
    reuse it for every forward call."""
    kparams = []
    for i in range(1, 6):
        w = jnp.asarray(params[f"w{i}"]).T.astype(jnp.bfloat16)   # (in, out)
        b = jnp.asarray(params[f"b{i}"]).reshape(1, -1).astype(jnp.float32)
        if i == 5:
            n_act = w.shape[1]
            w = jnp.pad(w, ((0, 0), (0, OUT_LANES - n_act)))
            b = jnp.pad(b, ((0, 0), (0, OUT_LANES - n_act)))
        kparams.append((w, b))
    return kparams


@functools.partial(jax.jit, static_argnums=2)
def base_network_forward(x, kparams, n_actions):
    """x: (B, n_observations) f32.  kparams: output of prepare_kernel_params."""
    B, n_obs = x.shape
    B_pad = pl.cdiv(B, TILE_B) * TILE_B
    if B_pad != B:
        x = jnp.pad(x, ((0, B_pad - B), (0, 0)))

    in_specs = [pl.BlockSpec((TILE_B, n_obs), lambda i: (i, 0))]
    args = [x]
    for w, b in kparams:
        # Constant block index -> weights/biases are not re-DMA'd per grid step.
        in_specs.append(pl.BlockSpec(w.shape, lambda i: (0, 0)))
        in_specs.append(pl.BlockSpec(b.shape, lambda i: (0, 0)))
        args.extend([w, b])

    out = pl.pallas_call(
        _mlp_kernel,
        out_shape=jax.ShapeDtypeStruct((B_pad, OUT_LANES), jnp.float32),
        grid=(B_pad // TILE_B,),
        in_specs=in_specs,
        out_specs=pl.BlockSpec((TILE_B, OUT_LANES), lambda i: (i, 0)),
        compiler_params=pltpu.CompilerParams(
            dimension_semantics=("parallel",)),
    )(*args)
    return out[:B, :n_actions]


def init_params(key, n_observations, n_actions):
    """PyTorch nn.Linear-style init (uniform +/- 1/sqrt(fan_in)), (out,in) layout."""
    dims = [(HIDDEN, n_observations),
            (HIDDEN, HIDDEN),
            (HIDDEN, HIDDEN),
            (HIDDEN, HIDDEN),
            (n_actions, HIDDEN)]
    params = {}
    for i, (out_f, in_f) in enumerate(dims, start=1):
        key, kw, kb = jax.random.split(key, 3)
        bound = 1.0 / jnp.sqrt(jnp.float32(in_f))
        params[f"w{i}"] = jax.random.uniform(
            kw, (out_f, in_f), jnp.float32, -bound, bound)
        params[f"b{i}"] = jax.random.uniform(
            kb, (out_f,), jnp.float32, -bound, bound)
    return params


def reference_forward(x, params):
    """Pure-JAX reference mirroring the kernel's bf16-input / f32-accumulate math."""
    h = x
    for i in range(1, 5):
        w = params[f"w{i}"].T.astype(jnp.bfloat16)
        h = jnp.dot(h.astype(jnp.bfloat16), w,
                    preferred_element_type=jnp.float32) + params[f"b{i}"]
        h = jnp.maximum(h, 0.0)
    w5 = params["w5"].T.astype(jnp.bfloat16)
    return jnp.dot(h.astype(jnp.bfloat16), w5,
                   preferred_element_type=jnp.float32) + params["b5"]


if __name__ == "__main__":
    key = jax.random.PRNGKey(0)
    n_observations, n_actions = 32, 8
    batch = 256   # amortize weight DMA / per-call overhead over many rows

    key, kx, kp = jax.random.split(key, 3)
    x = jax.random.normal(kx, (batch, n_observations), jnp.float32)
    params = init_params(kp, n_observations, n_actions)

    # One-time weight prep (transpose + bf16 cast + lane pad), reused per call.
    kparams = prepare_kernel_params(params)

    out = base_network_forward(x, kparams, n_actions)
    out = jax.block_until_ready(out)

    ref = reference_forward(x, params)
    assert out.shape == (batch, n_actions)
    assert jnp.allclose(out, ref, atol=2e-3, rtol=2e-3), "mismatch vs reference"

    print("KERNEL_OK")
</pallas_src>

<mosaic_0001>
module attributes {stable_mosaic.version = 11 : i64} {
  func.func @_mlp_kernel(%arg0: i32, %arg1: memref<128x32xf32, #tpu.memory_space<vmem>>, %arg2: memref<32x256xbf16, #tpu.memory_space<vmem>>, %arg3: memref<1x256xf32, #tpu.memory_space<vmem>>, %arg4: memref<256x256xbf16, #tpu.memory_space<vmem>>, %arg5: memref<1x256xf32, #tpu.memory_space<vmem>>, %arg6: memref<256x256xbf16, #tpu.memory_space<vmem>>, %arg7: memref<1x256xf32, #tpu.memory_space<vmem>>, %arg8: memref<256x256xbf16, #tpu.memory_space<vmem>>, %arg9: memref<1x256xf32, #tpu.memory_space<vmem>>, %arg10: memref<256x128xbf16, #tpu.memory_space<vmem>>, %arg11: memref<1x128xf32, #tpu.memory_space<vmem>>, %arg12: memref<128x128xf32, #tpu.memory_space<vmem>>) attributes {dimension_semantics = [#tpu.dimension_semantics<parallel>], iteration_bounds = array<i64: 2>, scalar_prefetch = 0 : i64, scratch_operands = 0 : i64, tpu.core_type = #tpu.core_type<tc>, window_params = [{transform_indices = @transform_0, window_bounds = array<i64: 128, 32>}, {pipeline_mode = #tpu.pipeline_mode<synchronous>, transform_indices = @transform_1, window_bounds = array<i64: 32, 256>}, {pipeline_mode = #tpu.pipeline_mode<synchronous>, transform_indices = @transform_2, window_bounds = array<i64: 1, 256>}, {pipeline_mode = #tpu.pipeline_mode<synchronous>, transform_indices = @transform_3, window_bounds = array<i64: 256, 256>}, {pipeline_mode = #tpu.pipeline_mode<synchronous>, transform_indices = @transform_4, window_bounds = array<i64: 1, 256>}, {pipeline_mode = #tpu.pipeline_mode<synchronous>, transform_indices = @transform_5, window_bounds = array<i64: 256, 256>}, {pipeline_mode = #tpu.pipeline_mode<synchronous>, transform_indices = @transform_6, window_bounds = array<i64: 1, 256>}, {pipeline_mode = #tpu.pipeline_mode<synchronous>, transform_indices = @transform_7, window_bounds = array<i64: 256, 256>}, {pipeline_mode = #tpu.pipeline_mode<synchronous>, transform_indices = @transform_8, window_bounds = array<i64: 1, 256>}, {pipeline_mode = #tpu.pipeline_mode<synchronous>, transform_indices = @transform_9, window_bounds = array<i64: 256, 128>}, {pipeline_mode = #tpu.pipeline_mode<synchronous>, transform_indices = @transform_10, window_bounds = array<i64: 1, 128>}, {transform_indices = @transform_11, window_bounds = array<i64: 128, 128>}]} {
    %c0 = arith.constant 0 : index
    %c0_0 = arith.constant 0 : index
    %0 = vector.load %arg1[%c0, %c0_0] : memref<128x32xf32, #tpu.memory_space<vmem>>, vector<128x32xf32>
    %1 = arith.truncf %0 : vector<128x32xf32> to vector<128x32xbf16>
    %c0_1 = arith.constant 0 : index
    %c0_2 = arith.constant 0 : index
    %2 = vector.load %arg2[%c0_1, %c0_2] : memref<32x256xbf16, #tpu.memory_space<vmem>>, vector<32x256xbf16>
    %cst = arith.constant dense<0.000000e+00> : vector<128x256xf32>
    %3 = tpu.matmul %1, %2, %cst {dimension_numbers = #tpu.dot_dimension_numbers<[1], [0], [0], [1], [0, 0, 1, 1], [], []>} : vector<128x32xbf16>, vector<32x256xbf16>, vector<128x256xf32> -> vector<128x256xf32>
    %c0_3 = arith.constant 0 : index
    %c0_4 = arith.constant 0 : index
    %4 = vector.load %arg3[%c0_3, %c0_4] : memref<1x256xf32, #tpu.memory_space<vmem>>, vector<1x256xf32>
    %5 = vector.broadcast %4 : vector<1x256xf32> to vector<128x256xf32>
    %6 = arith.addf %3, %5 : vector<128x256xf32>
    %cst_5 = arith.constant 0.000000e+00 : f32
    %7 = vector.broadcast %cst_5 : f32 to vector<128x256xf32>
    %8 = arith.maximumf %6, %7 : vector<128x256xf32>
    %9 = arith.truncf %8 : vector<128x256xf32> to vector<128x256xbf16>
    %c0_6 = arith.constant 0 : index
    %c0_7 = arith.constant 0 : index
    %10 = vector.load %arg4[%c0_6, %c0_7] : memref<256x256xbf16, #tpu.memory_space<vmem>>, vector<256x256xbf16>
    %cst_8 = arith.constant dense<0.000000e+00> : vector<128x256xf32>
    %11 = tpu.matmul %9, %10, %cst_8 {dimension_numbers = #tpu.dot_dimension_numbers<[1], [0], [0], [1], [0, 0, 1, 1], [], []>} : vector<128x256xbf16>, vector<256x256xbf16>, vector<128x256xf32> -> vector<128x256xf32>
    %c0_9 = arith.constant 0 : index
    %c0_10 = arith.constant 0 : index
    %12 = vector.load %arg5[%c0_9, %c0_10] : memref<1x256xf32, #tpu.memory_space<vmem>>, vector<1x256xf32>
    %13 = vector.broadcast %12 : vector<1x256xf32> to vector<128x256xf32>
    %14 = arith.addf %11, %13 : vector<128x256xf32>
    %cst_11 = arith.constant 0.000000e+00 : f32
    %15 = vector.broadcast %cst_11 : f32 to vector<128x256xf32>
    %16 = arith.maximumf %14, %15 : vector<128x256xf32>
    %17 = arith.truncf %16 : vector<128x256xf32> to vector<128x256xbf16>
    %c0_12 = arith.constant 0 : index
    %c0_13 = arith.constant 0 : index
    %18 = vector.load %arg6[%c0_12, %c0_13] : memref<256x256xbf16, #tpu.memory_space<vmem>>, vector<256x256xbf16>
    %cst_14 = arith.constant dense<0.000000e+00> : vector<128x256xf32>
    %19 = tpu.matmul %17, %18, %cst_14 {dimension_numbers = #tpu.dot_dimension_numbers<[1], [0], [0], [1], [0, 0, 1, 1], [], []>} : vector<128x256xbf16>, vector<256x256xbf16>, vector<128x256xf32> -> vector<128x256xf32>
    %c0_15 = arith.constant 0 : index
    %c0_16 = arith.constant 0 : index
    %20 = vector.load %arg7[%c0_15, %c0_16] : memref<1x256xf32, #tpu.memory_space<vmem>>, vector<1x256xf32>
    %21 = vector.broadcast %20 : vector<1x256xf32> to vector<128x256xf32>
    %22 = arith.addf %19, %21 : vector<128x256xf32>
    %cst_17 = arith.constant 0.000000e+00 : f32
    %23 = vector.broadcast %cst_17 : f32 to vector<128x256xf32>
    %24 = arith.maximumf %22, %23 : vector<128x256xf32>
    %25 = arith.truncf %24 : vector<128x256xf32> to vector<128x256xbf16>
    %c0_18 = arith.constant 0 : index
    %c0_19 = arith.constant 0 : index
    %26 = vector.load %arg8[%c0_18, %c0_19] : memref<256x256xbf16, #tpu.memory_space<vmem>>, vector<256x256xbf16>
    %cst_20 = arith.constant dense<0.000000e+00> : vector<128x256xf32>
    %27 = tpu.matmul %25, %26, %cst_20 {dimension_numbers = #tpu.dot_dimension_numbers<[1], [0], [0], [1], [0, 0, 1, 1], [], []>} : vector<128x256xbf16>, vector<256x256xbf16>, vector<128x256xf32> -> vector<128x256xf32>
    %c0_21 = arith.constant 0 : index
    %c0_22 = arith.constant 0 : index
    %28 = vector.load %arg9[%c0_21, %c0_22] : memref<1x256xf32, #tpu.memory_space<vmem>>, vector<1x256xf32>
    %29 = vector.broadcast %28 : vector<1x256xf32> to vector<128x256xf32>
    %30 = arith.addf %27, %29 : vector<128x256xf32>
    %cst_23 = arith.constant 0.000000e+00 : f32
    %31 = vector.broadcast %cst_23 : f32 to vector<128x256xf32>
    %32 = arith.maximumf %30, %31 : vector<128x256xf32>
    %33 = arith.truncf %32 : vector<128x256xf32> to vector<128x256xbf16>
    %c0_24 = arith.constant 0 : index
    %c0_25 = arith.constant 0 : index
    %34 = vector.load %arg10[%c0_24, %c0_25] : memref<256x128xbf16, #tpu.memory_space<vmem>>, vector<256x128xbf16>
    %cst_26 = arith.constant dense<0.000000e+00> : vector<128x128xf32>
    %35 = tpu.matmul %33, %34, %cst_26 {dimension_numbers = #tpu.dot_dimension_numbers<[1], [0], [0], [1], [0, 0, 1, 1], [], []>} : vector<128x256xbf16>, vector<256x128xbf16>, vector<128x128xf32> -> vector<128x128xf32>
    %c0_27 = arith.constant 0 : index
    %c0_28 = arith.constant 0 : index
    %36 = vector.load %arg11[%c0_27, %c0_28] : memref<1x128xf32, #tpu.memory_space<vmem>>, vector<1x128xf32>
    %37 = vector.broadcast %36 : vector<1x128xf32> to vector<128x128xf32>
    %38 = arith.addf %35, %37 : vector<128x128xf32>
    %c0_29 = arith.constant 0 : index
    %c0_30 = arith.constant 0 : index
    %39 = vector.load %arg12[%c0_29, %c0_30] : memref<128x128xf32, #tpu.memory_space<vmem>>, vector<128x128xf32>
    tpu.vector_store %arg12[%c0_29, %c0_30], %38 {strides = array<i32>} : memref<128x128xf32, #tpu.memory_space<vmem>>, vector<128x128xf32>,
    return
  }
  func.func @transform_0(%arg0: i32) -> (i32, i32) {
    %c0_i32 = arith.constant 0 : i32
    %c0_i32_0 = arith.constant 0 : i32
    return %arg0, %c0_i32 : i32, i32
  }
  func.func @transform_1(%arg0: i32) -> (i32, i32) {
    %c0_i32 = arith.constant 0 : i32
    %c0_i32_0 = arith.constant 0 : i32
    %c0_i32_1 = arith.constant 0 : i32
    return %c0_i32, %c0_i32_0 : i32, i32
  }
  func.func @transform_2(%arg0: i32) -> (i32, i32) {
    %c0_i32 = arith.constant 0 : i32
    %c0_i32_0 = arith.constant 0 : i32
    %c0_i32_1 = arith.constant 0 : i32
    return %c0_i32, %c0_i32_0 : i32, i32
  }
  func.func @transform_3(%arg0: i32) -> (i32, i32) {
    %c0_i32 = arith.constant 0 : i32
    %c0_i32_0 = arith.constant 0 : i32
    %c0_i32_1 = arith.constant 0 : i32
    return %c0_i32, %c0_i32_0 : i32, i32
  }
  func.func @transform_4(%arg0: i32) -> (i32, i32) {
    %c0_i32 = arith.constant 0 : i32
    %c0_i32_0 = arith.constant 0 : i32
    %c0_i32_1 = arith.constant 0 : i32
    return %c0_i32, %c0_i32_0 : i32, i32
  }
  func.func @transform_5(%arg0: i32) -> (i32, i32) {
    %c0_i32 = arith.constant 0 : i32
    %c0_i32_0 = arith.constant 0 : i32
    %c0_i32_1 = arith.constant 0 : i32
    return %c0_i32, %c0_i32_0 : i32, i32
  }
  func.func @transform_6(%arg0: i32) -> (i32, i32) {
    %c0_i32 = arith.constant 0 : i32
    %c0_i32_0 = arith.constant 0 : i32
    %c0_i32_1 = arith.constant 0 : i32
    return %c0_i32, %c0_i32_0 : i32, i32
  }
  func.func @transform_7(%arg0: i32) -> (i32, i32) {
    %c0_i32 = arith.constant 0 : i32
    %c0_i32_0 = arith.constant 0 : i32
    %c0_i32_1 = arith.constant 0 : i32
    return %c0_i32, %c0_i32_0 : i32, i32
  }
  func.func @transform_8(%arg0: i32) -> (i32, i32) {
    %c0_i32 = arith.constant 0 : i32
    %c0_i32_0 = arith.constant 0 : i32
    %c0_i32_1 = arith.constant 0 : i32
    return %c0_i32, %c0_i32_0 : i32, i32
  }
  func.func @transform_9(%arg0: i32) -> (i32, i32) {
    %c0_i32 = arith.constant 0 : i32
    %c0_i32_0 = arith.constant 0 : i32
    %c0_i32_1 = arith.constant 0 : i32
    return %c0_i32, %c0_i32_0 : i32, i32
  }
  func.func @transform_10(%arg0: i32) -> (i32, i32) {
    %c0_i32 = arith.constant 0 : i32
    %c0_i32_0 = arith.constant 0 : i32
    %c0_i32_1 = arith.constant 0 : i32
    return %c0_i32, %c0_i32_0 : i32, i32
  }
  func.func @transform_11(%arg0: i32) -> (i32, i32) {
    %c0_i32 = arith.constant 0 : i32
    %c0_i32_0 = arith.constant 0 : i32
    return %arg0, %c0_i32 : i32, i32
  }
}

</mosaic_0001>

<llo_original>
// kernel: base_network_forward.1
$region0: #{base_network_forward.1}
  #allocation0 [shape = 'u32[]', space=smem, size = 0x4, offset = 0x4, fixed_abs, tag = 'smem constant byte address 0x4 - core index']
  #allocation1 [shape = 'u32[72,128]{1,0:T(1,128)}', space=vmem, size = 0x9000, scoped, tag = 'internal scratch']
  %s0 = inlined_call_operand.vmem [shape: f32[256,32], index: 0, kind: input, shape index: {}]
  %s1 = inlined_call_operand.vmem [shape: bf16[32,256], index: 1, kind: input, shape index: {}]
  %s2 = inlined_call_operand.vmem [shape: f32[1,256], index: 2, kind: input, shape index: {}]
  %s3 = inlined_call_operand.vmem [shape: bf16[256,256], index: 3, kind: input, shape index: {}]
  %s4 = inlined_call_operand.vmem [shape: f32[1,256], index: 4, kind: input, shape index: {}]
  %s5 = inlined_call_operand.hbm [shape: bf16[256,256], index: 5, kind: input, shape index: {}]
  %s6 = inlined_call_operand.vmem [shape: f32[1,256], index: 6, kind: input, shape index: {}]
  %s7 = inlined_call_operand.hbm [shape: bf16[256,256], index: 7, kind: input, shape index: {}]
  %s8 = inlined_call_operand.vmem [shape: f32[1,256], index: 8, kind: input, shape index: {}]
  %s9 = inlined_call_operand.hbm [shape: bf16[256,128], index: 9, kind: input, shape index: {}]
  %s10 = inlined_call_operand.vmem [shape: f32[1,128], index: 10, kind: input, shape index: {}]
  %s11 = inlined_call_operand.vmem [shape: f32[256,128], index: 11, kind: output, shape index: {}]
  %s12 = sld [smem:[#allocation0]]
  $region89: #{base_network_forward.1} parent=0
    _
  %s14 = ssub.s32 1, %s12
  %s15 = scalar_select 0, %s14, %s12
  $region1: #{base_network_forward.1} parent=0
    #allocation2 [shape = 'u8[131072]{0}', space=vmem, size = 0x20000, scoped, tag = 'input window, operand 5, single buffered']
    #allocation3 [shape = 's32[2]{0}', space=sflag, size = 0x8, scoped, tag = 'scoped memory for base_network_forward.1']
    #allocation4 [shape = 'u8[131072]{0}', space=vmem, size = 0x20000, scoped, tag = 'input window, operand 7, single buffered']
    #allocation5 [shape = 's32[1]{0}', space=sflag, size = 0x4, scoped, tag = 'scoped memory for base_network_forward.1']
    #allocation6 [shape = 'u8[65536]{0}', space=vmem, size = 0x10000, scoped, tag = 'input window, operand 9, single buffered']
    %16 = vsyncpa [#allocation3], 0
    %17 = vsyncpa [#allocation5], 0
    loop: start=0, step=1, limit=4
    $region2: #{base_network_forward.1} parent=1 // loop_pre_header
      _
    $region3: #{base_network_forward.1} parent=1 // loop_header
      %s19 = sphi 0, %s23
      %p20 = scmp.ge.s32.totalorder %s19, 4
      %s29 = sphi 0, %s31
      %s32 = sphi 0, %s29
      %s33 = sphi 0, %s32
      %s49 = sphi 0, %s33
      %s53 = sphi 0, %s53
      %s55 = sphi 0, %s53
      %s56 = sphi 0, %s55
      %s70 = sphi 0, %s56
      %s74 = sphi 0, %s74
      %s76 = sphi 0, %s74
      %s77 = sphi 0, %s76
      %s91 = sphi 0, %s77
      %s95 = sphi 0, %s95
      %s97 = sphi 0, %s95
      %s98 = sphi 0, %s97
      %s112 = sphi 0, %s98
      %s116 = sphi 0, %s116
      %s118 = sphi 0, %s116
      %s119 = sphi 0, %s118
      %s133 = sphi 0, %s119
      %s137 = sphi 0, %s137
      %s139 = sphi 0, %s137
      %s140 = sphi 0, %s139
      %s154 = sphi 0, %s140
      %s158 = sphi 0, %s158
      %s160 = sphi 0, %s158
      %s161 = sphi 0, %s160
      %s175 = sphi 0, %s161
      %s179 = sphi 0, %s179
      %s181 = sphi 0, %s179
      %s182 = sphi 0, %s181
      %s196 = sphi 0, %s182
      %s200 = sphi 0, %s200
      %s202 = sphi 0, %s200
      %s203 = sphi 0, %s202
      %s217 = sphi 0, %s203
      %s221 = sphi 0, %s221
      %s223 = sphi 0, %s221
      %s224 = sphi 0, %s223
      %s238 = sphi 0, %s224
      %s242 = sphi 0, %s242
      %s244 = sphi 0, %s242
      %s245 = sphi 0, %s244
      %s259 = sphi 0, %s245
      %s265 = sphi 0, %s267
      %s268 = sphi 0, %s265
      %s269 = sphi 0, %s268
      %s285 = sphi 0, %s269
    $region4: #{base_network_forward.1} parent=1 // loop_header_branch
      %22 = sbr.rel (%p20) target = $region8
    $region5: #{base_network_forward.1} parent=1 // loop_body
      %s24 = ssub.s32 %s19, 1
      %s25 = ssub.s32 %s19, 2
      %s26 = sadd.s32 %s19, 1
      %s27 = ssub.s32 %s19, %s26
      %p28 = scmp.eq.s32.totalorder %s27, 0
      %s30 = sadd.s32 %s29, 1
      %s31 = scalar_select %p28, %s29, %s30
      %p34 = pneg %p28
      %p35 = scmp.eq.s32.totalorder %s19, 1
      %p36 = por %p34, %p35
      %p37 = scmp.ne.s32.totalorder %s29, %s32
      %p38 = scmp.eq.s32.totalorder %s19, 0
      %p39 = por %p37, %p38
      %p40 = scmp.ne.s32.totalorder %s29, %s32
      %p41 = scmp.eq.s32.totalorder %s24, 1
      %p42 = por %p40, %p41
      %p43 = scmp.ne.s32.totalorder %s32, %s33
      %p44 = scmp.eq.s32.totalorder %s24, 0
      %p45 = por %p43, %p44
      %p46 = scmp.ne.s32.totalorder %s32, %s33
      %p47 = scmp.eq.s32.totalorder %s25, 1
      %p48 = por %p46, %p47
      %p50 = scmp.ne.s32.totalorder %s33, %s49
      %p51 = scmp.eq.s32.totalorder %s25, 0
      %p52 = por %p50, %p51
      %s54 = sadd.s32 %s53, 1
      %p57 = scmp.eq.s32.totalorder %s19, 1
      %p58 = scmp.ne.s32.totalorder %s53, %s55
      %p59 = scmp.eq.s32.totalorder %s19, 0
      %p60 = por %p58, %p59
      %p61 = scmp.ne.s32.totalorder %s53, %s55
      %p62 = scmp.eq.s32.totalorder %s24, 1
      %p63 = por %p61, %p62
      %p64 = scmp.ne.s32.totalorder %s55, %s56
      %p65 = scmp.eq.s32.totalorder %s24, 0
      %p66 = por %p64, %p65
      %p67 = scmp.ne.s32.totalorder %s55, %s56
      %p68 = scmp.eq.s32.totalorder %s25, 1
      %p69 = por %p67, %p68
      %p71 = scmp.ne.s32.totalorder %s56, %s70
      %p72 = scmp.eq.s32.totalorder %s25, 0
      %p73 = por %p71, %p72
      %s75 = sadd.s32 %s74, 1
      %p78 = scmp.eq.s32.totalorder %s19, 1
      %p79 = scmp.ne.s32.totalorder %s74, %s76
      %p80 = scmp.eq.s32.totalorder %s19, 0
      %p81 = por %p79, %p80
      %p82 = scmp.ne.s32.totalorder %s74, %s76
      %p83 = scmp.eq.s32.totalorder %s24, 1
      %p84 = por %p82, %p83
      %p85 = scmp.ne.s32.totalorder %s76, %s77
      %p86 = scmp.eq.s32.totalorder %s24, 0
      %p87 = por %p85, %p86
      %p88 = scmp.ne.s32.totalorder %s76, %s77
      %p89 = scmp.eq.s32.totalorder %s25, 1
      %p90 = por %p88, %p89
      %p92 = scmp.ne.s32.totalorder %s77, %s91
      %p93 = scmp.eq.s32.totalorder %s25, 0
      %p94 = por %p92, %p93
      %s96 = sadd.s32 %s95, 1
      %p99 = scmp.eq.s32.totalorder %s19, 1
      %p100 = scmp.ne.s32.totalorder %s95, %s97
      %p101 = scmp.eq.s32.totalorder %s19, 0
      %p102 = por %p100, %p101
      %p103 = scmp.ne.s32.totalorder %s95, %s97
      %p104 = scmp.eq.s32.totalorder %s24, 1
      %p105 = por %p103, %p104
      %p106 = scmp.ne.s32.totalorder %s97, %s98
      %p107 = scmp.eq.s32.totalorder %s24, 0
      %p108 = por %p106, %p107
      %p109 = scmp.ne.s32.totalorder %s97, %s98
      %p110 = scmp.eq.s32.totalorder %s25, 1
      %p111 = por %p109, %p110
      %p113 = scmp.ne.s32.totalorder %s98, %s112
      %p114 = scmp.eq.s32.totalorder %s25, 0
      %p115 = por %p113, %p114
      %s117 = sadd.s32 %s116, 1
      %p120 = scmp.eq.s32.totalorder %s19, 1
      %p121 = scmp.ne.s32.totalorder %s116, %s118
      %p122 = scmp.eq.s32.totalorder %s19, 0
      %p123 = por %p121, %p122
      %p124 = scmp.ne.s32.totalorder %s116, %s118
      %p125 = scmp.eq.s32.totalorder %s24, 1
      %p126 = por %p124, %p125
      %p127 = scmp.ne.s32.totalorder %s118, %s119
      %p128 = scmp.eq.s32.totalorder %s24, 0
      %p129 = por %p127, %p128
      %p130 = scmp.ne.s32.totalorder %s118, %s119
      %p131 = scmp.eq.s32.totalorder %s25, 1
      %p132 = por %p130, %p131
      %p134 = scmp.ne.s32.totalorder %s119, %s133
      %p135 = scmp.eq.s32.totalorder %s25, 0
      %p136 = por %p134, %p135
      %s138 = sadd.s32 %s137, 1
      %p141 = scmp.eq.s32.totalorder %s19, 1
      %p142 = scmp.ne.s32.totalorder %s137, %s139
      %p143 = scmp.eq.s32.totalorder %s19, 0
      %p144 = por %p142, %p143
      %p145 = scmp.ne.s32.totalorder %s137, %s139
      %p146 = scmp.eq.s32.totalorder %s24, 1
      %p147 = por %p145, %p146
      %p148 = scmp.ne.s32.totalorder %s139, %s140
      %p149 = scmp.eq.s32.totalorder %s24, 0
      %p150 = por %p148, %p149
      %p151 = scmp.ne.s32.totalorder %s139, %s140
      %p152 = scmp.eq.s32.totalorder %s25, 1
      %p153 = por %p151, %p152
      %p155 = scmp.ne.s32.totalorder %s140, %s154
      %p156 = scmp.eq.s32.totalorder %s25, 0
      %p157 = por %p155, %p156
      %s159 = sadd.s32 %s158, 1
      %p162 = scmp.eq.s32.totalorder %s19, 1
      %p163 = scmp.ne.s32.totalorder %s158, %s160
      %p164 = scmp.eq.s32.totalorder %s19, 0
      %p165 = por %p163, %p164
      %p166 = scmp.ne.s32.totalorder %s158, %s160
      %p167 = scmp.eq.s32.totalorder %s24, 1
      %p168 = por %p166, %p167
      %p169 = scmp.ne.s32.totalorder %s160, %s161
      %p170 = scmp.eq.s32.totalorder %s24, 0
      %p171 = por %p169, %p170
      %p172 = scmp.ne.s32.totalorder %s160, %s161
      %p173 = scmp.eq.s32.totalorder %s25, 1
      %p174 = por %p172, %p173
      %p176 = scmp.ne.s32.totalorder %s161, %s175
      %p177 = scmp.eq.s32.totalorder %s25, 0
      %p178 = por %p176, %p177
      %s180 = sadd.s32 %s179, 1
      %p183 = scmp.eq.s32.totalorder %s19, 1
      %p184 = scmp.ne.s32.totalorder %s179, %s181
      %p185 = scmp.eq.s32.totalorder %s19, 0
      %p186 = por %p184, %p185
      %p187 = scmp.ne.s32.totalorder %s179, %s181
      %p188 = scmp.eq.s32.totalorder %s24, 1
      %p189 = por %p187, %p188
      %p190 = scmp.ne.s32.totalorder %s181, %s182
      %p191 = scmp.eq.s32.totalorder %s24, 0
      %p192 = por %p190, %p191
      %p193 = scmp.ne.s32.totalorder %s181, %s182
      %p194 = scmp.eq.s32.totalorder %s25, 1
      %p195 = por %p193, %p194
      %p197 = scmp.ne.s32.totalorder %s182, %s196
      %p198 = scmp.eq.s32.totalorder %s25, 0
      %p199 = por %p197, %p198
      %s201 = sadd.s32 %s200, 1
      %p204 = scmp.eq.s32.totalorder %s19, 1
      %p205 = scmp.ne.s32.totalorder %s200, %s202
      %p206 = scmp.eq.s32.totalorder %s19, 0
      %p207 = por %p205, %p206
      %p208 = scmp.ne.s32.totalorder %s200, %s202
      %p209 = scmp.eq.s32.totalorder %s24, 1
      %p210 = por %p208, %p209
      %p211 = scmp.ne.s32.totalorder %s202, %s203
      %p212 = scmp.eq.s32.totalorder %s24, 0
      %p213 = por %p211, %p212
      %p214 = scmp.ne.s32.totalorder %s202, %s203
      %p215 = scmp.eq.s32.totalorder %s25, 1
      %p216 = por %p214, %p215
      %p218 = scmp.ne.s32.totalorder %s203, %s217
      %p219 = scmp.eq.s32.totalorder %s25, 0
      %p220 = por %p218, %p219
      %s222 = sadd.s32 %s221, 1
      %p225 = scmp.eq.s32.totalorder %s19, 1
      %p226 = scmp.ne.s32.totalorder %s221, %s223
      %p227 = scmp.eq.s32.totalorder %s19, 0
      %p228 = por %p226, %p227
      %p229 = scmp.ne.s32.totalorder %s221, %s223
      %p230 = scmp.eq.s32.totalorder %s24, 1
      %p231 = por %p229, %p230
      %p232 = scmp.ne.s32.totalorder %s223, %s224
      %p233 = scmp.eq.s32.totalorder %s24, 0
      %p234 = por %p232, %p233
      %p235 = scmp.ne.s32.totalorder %s223, %s224
      %p236 = scmp.eq.s32.totalorder %s25, 1
      %p237 = por %p235, %p236
      %p239 = scmp.ne.s32.totalorder %s224, %s238
      %p240 = scmp.eq.s32.totalorder %s25, 0
      %p241 = por %p239, %p240
      %s243 = sadd.s32 %s242, 1
      %p246 = scmp.eq.s32.totalorder %s19, 1
      %p247 = scmp.ne.s32.totalorder %s242, %s244
      %p248 = scmp.eq.s32.totalorder %s19, 0
      %p249 = por %p247, %p248
      %p250 = scmp.ne.s32.totalorder %s242, %s244
      %p251 = scmp.eq.s32.totalorder %s24, 1
      %p252 = por %p250, %p251
      %p253 = scmp.ne.s32.totalorder %s244, %s245
      %p254 = scmp.eq.s32.totalorder %s24, 0
      %p255 = por %p253, %p254
      %p256 = scmp.ne.s32.totalorder %s244, %s245
      %p257 = scmp.eq.s32.totalorder %s25, 1
      %p258 = por %p256, %p257
      %p260 = scmp.ne.s32.totalorder %s245, %s259
      %p261 = scmp.eq.s32.totalorder %s25, 0
      %p262 = por %p260, %p261
      %s263 = ssub.s32 %s19, %s26
      %p264 = scmp.eq.s32.totalorder %s263, 0
      %s266 = sadd.s32 %s265, 1
      %s267 = scalar_select %p264, %s265, %s266
      %p270 = pneg %p264
      %p271 = scmp.eq.s32.totalorder %s19, 1
      %p272 = por %p270, %p271
      %p273 = scmp.ne.s32.totalorder %s265, %s268
      %p274 = scmp.eq.s32.totalorder %s19, 0
      %p275 = por %p273, %p274
      %p276 = scmp.ne.s32.totalorder %s265, %s268
      %p277 = scmp.eq.s32.totalorder %s24, 1
      %p278 = por %p276, %p277
      %p279 = scmp.ne.s32.totalorder %s268, %s269
      %p280 = scmp.eq.s32.totalorder %s24, 0
      %p281 = por %p279, %p280
      %p282 = scmp.ne.s32.totalorder %s268, %s269
      %p283 = scmp.eq.s32.totalorder %s25, 1
      %p284 = por %p282, %p283
      %p286 = scmp.ne.s32.totalorder %s269, %s285
      %p287 = scmp.eq.s32.totalorder %s25, 0
      %p288 = por %p286, %p287
      %p289 = scmp.le.s32.totalorder 1, %s19
      %p290 = scmp.lt.s32.totalorder %s19, 3
      %p291 = pnand %p289, %p290
      %p292 = pneg %p291
      // Predicated region
      $region9: #{base_network_forward.1} parent=5 // pred_check
        _
      $region10: #{base_network_forward.1} parent=5 // pred_check_branch
        %294 = sbr.rel (%p291) target = $region12
      $region11: #{base_network_forward.1} parent=5 // pred_region
        %s295 = ssub.s32 %s19, 1
        // Predicated region
        $region13: #{base_network_forward.1} parent=11 // pred_check
          %p296 = pneg %p66
        $region14: #{base_network_forward.1} parent=11 // pred_check_branch
          %298 = sbr.rel (%p296) target = $region16
        $region15: #{base_network_forward.1} parent=11 // pred_region
          _
        $region16: #{base_network_forward.1} parent=11 // pred_fallthru
          _
        // Predicated region
        $region17: #{base_network_forward.1} parent=11 // pred_check
          %p299 = pneg %p87
        $region18: #{base_network_forward.1} parent=11 // pred_check_branch
          %301 = sbr.rel (%p299) target = $region20
        $region19: #{base_network_forward.1} parent=11 // pred_region
          _
        $region20: #{base_network_forward.1} parent=11 // pred_fallthru
          _
        // Predicated region
        $region21: #{base_network_forward.1} parent=11 // pred_check
          %p302 = pneg %p108
        $region22: #{base_network_forward.1} parent=11 // pred_check_branch
          %304 = sbr.rel (%p302) target = $region24
        $region23: #{base_network_forward.1} parent=11 // pred_region
          _
        $region24: #{base_network_forward.1} parent=11 // pred_fallthru
          _
        // Predicated region
        $region25: #{base_network_forward.1} parent=11 // pred_check
          %p305 = pneg %p129
        $region26: #{base_network_forward.1} parent=11 // pred_check_branch
          %307 = sbr.rel (%p305) target = $region28
        $region27: #{base_network_forward.1} parent=11 // pred_region
          _
        $region28: #{base_network_forward.1} parent=11 // pred_fallthru
          _
        // Predicated region
        $region29: #{base_network_forward.1} parent=11 // pred_check
          %p308 = pneg %p150
        $region30: #{base_network_forward.1} parent=11 // pred_check_branch
          %310 = sbr.rel (%p308) target = $region32
        $region31: #{base_network_forward.1} parent=11 // pred_region
          %312 = vsyncadd [#allocation3], 0
          %s313 = sshll.u32 %s5, 4
          %s314 = int_to_ptr.hbm [resolvable:$true] %s313
          %s315 = sshll.u32 [#allocation2], 4
          %s316 = int_to_ptr.vmem [resolvable:$true] %s315
          %321 = dma.hbm_to_vmem [thread:$0]  %s314, 4096, %s316, [#allocation3], 128, 128, 8
        $region32: #{base_network_forward.1} parent=11 // pred_fallthru
          _
        // Predicated region
        $region33: #{base_network_forward.1} parent=11 // pred_check
          %p322 = pneg %p171
        $region34: #{base_network_forward.1} parent=11 // pred_check_branch
          %324 = sbr.rel (%p322) target = $region36
        $region35: #{base_network_forward.1} parent=11 // pred_region
          _
        $region36: #{base_network_forward.1} parent=11 // pred_fallthru
          _
        // Predicated region
        $region37: #{base_network_forward.1} parent=11 // pred_check
          %p325 = pneg %p192
        $region38: #{base_network_forward.1} parent=11 // pred_check_branch
          %327 = sbr.rel (%p325) target = $region40
        $region39: #{base_network_forward.1} parent=11 // pred_region
          %329 = vsyncadd [#allocation5], 0
          %s330 = sshll.u32 %s7, 4
          %s331 = int_to_ptr.hbm [resolvable:$true] %s330
          %s332 = sshll.u32 [#allocation4], 4
          %s333 = int_to_ptr.vmem [resolvable:$true] %s332
          %338 = dma.hbm_to_vmem [thread:$0]  %s331, 4096, %s333, [#allocation5], 128, 128, 8
        $region40: #{base_network_forward.1} parent=11 // pred_fallthru
          _
        // Predicated region
        $region41: #{base_network_forward.1} parent=11 // pred_check
          %p339 = pneg %p213
        $region42: #{base_network_forward.1} parent=11 // pred_check_branch
          %341 = sbr.rel (%p339) target = $region44
        $region43: #{base_network_forward.1} parent=11 // pred_region
          _
        $region44: #{base_network_forward.1} parent=11 // pred_fallthru
          _
        // Predicated region
        $region45: #{base_network_forward.1} parent=11 // pred_check
          %p342 = pneg %p234
        $region46: #{base_network_forward.1} parent=11 // pred_check_branch
          %344 = sbr.rel (%p342) target = $region48
        $region47: #{base_network_forward.1} parent=11 // pred_region
          %346 = vsyncadd [#allocation5], 0
          %s347 = sshll.u32 %s9, 4
          %s348 = int_to_ptr.hbm [resolvable:$true] %s347
          %s349 = sshll.u32 [#allocation6], 4
          %s350 = int_to_ptr.vmem [resolvable:$true] %s349
          %355 = dma.hbm_to_vmem [thread:$0]  %s348, 2048, %s350, [#allocation5], 64, 64, 4
        $region48: #{base_network_forward.1} parent=11 // pred_fallthru
          _
        // Predicated region
        $region49: #{base_network_forward.1} parent=11 // pred_check
          %p356 = pneg %p255
        $region50: #{base_network_forward.1} parent=11 // pred_check_branch
          %358 = sbr.rel (%p356) target = $region52
        $region51: #{base_network_forward.1} parent=11 // pred_region
          _
        $region52: #{base_network_forward.1} parent=11 // pred_fallthru
          _
      $region12: #{base_network_forward.1} parent=5 // pred_fallthru
        _
      %p359 = scmp.lt.s32.totalorder %s19, 2
      // Predicated region
      $region53: #{base_network_forward.1} parent=5 // pred_check
        %p360 = pneg %p359
      $region54: #{base_network_forward.1} parent=5 // pred_check_branch
        %362 = sbr.rel (%p360) target = $region56
      $region55: #{base_network_forward.1} parent=5 // pred_region
        // Predicated region
        $region57: #{base_network_forward.1} parent=55 // pred_check
          %p363 = pneg %p39
        $region58: #{base_network_forward.1} parent=55 // pred_check_branch
          %365 = sbr.rel (%p363) target = $region60
        $region59: #{base_network_forward.1} parent=55 // pred_region
          %s366 = smul.u32 16, %s19
          %p367 = scmp.lt.s32.totalorder %s366, 31
          %s368 = scalar_select %p367, %s366, 31
          %s369 = smul.addr %s368, 8
          %s370 = scalar_lea.vmem %s0, %s369
          %s371 = smul.u32 16, %s19
        $region60: #{base_network_forward.1} parent=55 // pred_fallthru
          _
      $region56: #{base_network_forward.1} parent=5 // pred_fallthru
        _
      %p372 = scmp.le.s32.totalorder 1, %s19
      %p373 = scmp.lt.s32.totalorder %s19, 3
      %p374 = pnand %p372, %p373
      %p375 = pneg %p374
      // Predicated region
      $region61: #{base_network_forward.1} parent=5 // pred_check
        _
      $region62: #{base_network_forward.1} parent=5 // pred_check_branch
        %377 = sbr.rel (%p374) target = $region64
      $region63: #{base_network_forward.1} parent=5 // pred_region
        %s378 = ssub.s32 %s19, 1
        // Predicated region
        $region65: #{base_network_forward.1} parent=63 // pred_check
          %p379 = pneg %p150
        $region66: #{base_network_forward.1} parent=63 // pred_check_branch
          %381 = sbr.rel (%p379) target = $region68
        $region67: #{base_network_forward.1} parent=63 // pred_region
          %383 = dma.done [#allocation3], 4096
        $region68: #{base_network_forward.1} parent=63 // pred_fallthru
          _
        // Predicated region
        $region69: #{base_network_forward.1} parent=63 // pred_check
          %p384 = pneg %p192
        $region70: #{base_network_forward.1} parent=63 // pred_check_branch
          %386 = sbr.rel (%p384) target = $region72
        $region71: #{base_network_forward.1} parent=63 // pred_region
          %388 = dma.done [#allocation5], 4096
        $region72: #{base_network_forward.1} parent=63 // pred_fallthru
          _
        // Predicated region
        $region73: #{base_network_forward.1} parent=63 // pred_check
          %p389 = pneg %p234
        $region74: #{base_network_forward.1} parent=63 // pred_check_branch
          %391 = sbr.rel (%p389) target = $region76
        $region75: #{base_network_forward.1} parent=63 // pred_region
          %393 = dma.done [#allocation5], 2048
        $region76: #{base_network_forward.1} parent=63 // pred_fallthru
          _
        %s394 = smul.u32 16, %s24
        %p395 = scmp.lt.s32.totalorder %s394, 31
        %s396 = scalar_select %p395, %s394, 31
        %s397 = smul.addr %s396, 8
        %s398 = scalar_lea.vmem %s0, %s397
        %p399 = pneg %p45
        %p400 = pneg %p42
        %p401 = pneg %p66
        %p402 = pneg %p63
        %p403 = pneg %p87
        %p404 = pneg %p84
        %p405 = pneg %p108
        %p406 = pneg %p105
        %p407 = pneg %p129
        %p408 = pneg %p126
        %p409 = pneg %p150
        %p410 = pneg %p147
        %p411 = pneg %p171
        %p412 = pneg %p168
        %p413 = pneg %p192
        %p414 = pneg %p189
        %p415 = pneg %p213
        %p416 = pneg %p210
        %p417 = pneg %p234
        %p418 = pneg %p231
        %p419 = pneg %p255
        %p420 = pneg %p252
        %p421 = pneg %p281
        %p422 = pneg %p278
        %s423 = smul.u32 16, %s24
        %p424 = scmp.lt.s32.totalorder %s423, 31
        %s425 = scalar_select %p424, %s423, 31
        %s426 = smul.addr %s425, 8
        %s427 = scalar_lea.vmem %s11, %s426
        %s428 = smul.u32 16, %s24
        %p429 = scmp.lt.s32.totalorder %s428, 31
        %s430 = scalar_select %p429, %s428, 31
        %s431 = smul.addr %s430, 8
        %s432 = scalar_lea.vmem %s0, %s431
        %s433 = smul.u32 16, %s24
        %s434 = smul.u32 16, %s24
        %p435 = scmp.lt.s32.totalorder %s434, 31
        %s436 = scalar_select %p435, %s434, 31
        %s437 = smul.addr %s436, 8
        %s438 = scalar_lea.vmem %s11, %s437
        %s439 = smul.u32 16, %s24
        %v441 = vld [vmem:[%s432] sm:$0xff]
        %v442 = vld [vmem:[%s432 + $0x8] sm:$0xff]
        %v443 = vld [vmem:[%s432 + $0x10] sm:$0xff]
        %v444 = vld [vmem:[%s432 + $0x18] sm:$0xff]
        %v445 = vld [vmem:[%s432 + $0x20] sm:$0xff]
        %v446 = vld [vmem:[%s432 + $0x28] sm:$0xff]
        %v447 = vld [vmem:[%s432 + $0x30] sm:$0xff]
        %v448 = vld [vmem:[%s432 + $0x38] sm:$0xff]
        %v449 = vld [vmem:[%s432 + $0x40] sm:$0xff]
        %v450 = vld [vmem:[%s432 + $0x48] sm:$0xff]
        %v451 = vld [vmem:[%s432 + $0x50] sm:$0xff]
        %v452 = vld [vmem:[%s432 + $0x58] sm:$0xff]
        %v453 = vld [vmem:[%s432 + $0x60] sm:$0xff]
        %v454 = vld [vmem:[%s432 + $0x68] sm:$0xff]
        %v455 = vld [vmem:[%s432 + $0x70] sm:$0xff]
        %v456 = vld [vmem:[%s432 + $0x78] sm:$0xff]
        %v457 = vpack.c.bf16 %v442, %v441
        %v458 = vpack.c.bf16 %v444, %v443
        %v459 = vpack.c.bf16 %v446, %v445
        %v460 = vpack.c.bf16 %v448, %v447
        %v461 = vpack.c.bf16 %v450, %v449
        %v462 = vpack.c.bf16 %v452, %v451
        %v463 = vpack.c.bf16 %v454, %v453
        %v464 = vpack.c.bf16 %v456, %v455
        %v465 = vld [vmem:[%s1] sm:$0xff]
        %v466 = vld [vmem:[%s1 + $0x8] sm:$0xff]
        %v467 = vld [vmem:[%s1 + $0x10] sm:$0xff]
        %v468 = vld [vmem:[%s1 + $0x18] sm:$0xff]
        %v469 = vld [vmem:[%s2] sm:$0x3]
        %v471 = vperm.slane %v469, 0
        %v472 = vperm.slane %v469, 1
        %v479 = vunpack.c.l.b16 %v465
        %v480 = vunpack.c.h.b16 %v465
        %v481 = vunpack.c.l.b16 %v466
        %v482 = vunpack.c.h.b16 %v466
        %v483 = vunpack.c.l.b16 %v467
        %v484 = vunpack.c.h.b16 %v467
        %v485 = vunpack.c.l.b16 %v468
        %v486 = vunpack.c.h.b16 %v468
        %v487 = vpack.c.b16 %v481, %v479
        %v488 = vpack.c.b16 %v482, %v480
        %v489 = vpack.c.b16 %v485, %v483
        %v490 = vpack.c.b16 %v486, %v484
        %vm495 = vcmask 261120
        %v497 = vsel %vm495, %v457, 0
        %v500 = vsel %vm495, %v458, 0
        %v503 = vsel %vm495, %v459, 0
        %v506 = vsel %vm495, %v460, 0
        %v509 = vsel %vm495, %v461, 0
        %v512 = vsel %vm495, %v462, 0
        %v515 = vsel %vm495, %v463, 0
        %v518 = vsel %vm495, %v464, 0
        %520 = vmatpush.bf16.msra.mxu0 0
        %521 = vmatpush.bf16.msra.mxu0 0
        %522 = vmatpush.bf16.msra.mxu0 0
        %523 = vmatpush.bf16.msra.mxu0 0
        %524 = vmatpush.bf16.msra.mxu0 0
        %525 = vmatpush.bf16.msra.mxu0 0
        %526 = vmatpush.bf16.msra.mxu0 %v489
        %527 = vmatpush.bf16.msra.mxu0 %v487
        %528 = vmatmul.bf16.gmra.mxu0 %v497
        %v529 = vpop.f32.mrf.mxu0
        %v530 = vadd.f32 %v471, %v529
        %v531 = vpop.f32.mrf.mxu0
        %v532 = vadd.f32 %v471, %v531
        %533 = vmatmul.bf16.gmra.mxu0 %v500
        %v534 = vpop.f32.mrf.mxu0
        %v535 = vadd.f32 %v471, %v534
        %v536 = vpop.f32.mrf.mxu0
        %v537 = vadd.f32 %v471, %v536
        %538 = vmatmul.bf16.gmra.mxu0 %v503
        %v539 = vpop.f32.mrf.mxu0
        %v540 = vadd.f32 %v471, %v539
        %v541 = vpop.f32.mrf.mxu0
        %v542 = vadd.f32 %v471, %v541
        %543 = vmatmul.bf16.gmra.mxu0 %v506
        %v544 = vpop.f32.mrf.mxu0
        %v545 = vadd.f32 %v471, %v544
        %v546 = vpop.f32.mrf.mxu0
        %v547 = vadd.f32 %v471, %v546
        %548 = vmatmul.bf16.gmra.mxu0 %v509
        %v549 = vpop.f32.mrf.mxu0
        %v550 = vadd.f32 %v471, %v549
        %v551 = vpop.f32.mrf.mxu0
        %v552 = vadd.f32 %v471, %v551
        %553 = vmatmul.bf16.gmra.mxu0 %v512
        %v554 = vpop.f32.mrf.mxu0
        %v555 = vadd.f32 %v471, %v554
        %v556 = vpop.f32.mrf.mxu0
        %v557 = vadd.f32 %v471, %v556
        %558 = vmatmul.bf16.gmra.mxu0 %v515
        %v559 = vpop.f32.mrf.mxu0
        %v560 = vadd.f32 %v471, %v559
        %v561 = vpop.f32.mrf.mxu0
        %v562 = vadd.f32 %v471, %v561
        %563 = vmatmul.bf16.gmra.mxu0 %v518
        %v564 = vpop.f32.mrf.mxu0
        %v565 = vadd.f32 %v471, %v564
        %v566 = vpop.f32.mrf.mxu0
        %v567 = vadd.f32 %v471, %v566
        %568 = vdwg.mxu0
        %569 = vmatpush.bf16.msra.mxu0 0
        %570 = vmatpush.bf16.msra.mxu0 0
        %571 = vmatpush.bf16.msra.mxu0 0
        %572 = vmatpush.bf16.msra.mxu0 0
        %573 = vmatpush.bf16.msra.mxu0 0
        %574 = vmatpush.bf16.msra.mxu0 0
        %575 = vmatpush.bf16.msra.mxu0 %v490
        %576 = vmatpush.bf16.msra.mxu0 %v488
        %577 = vmatmul.bf16.gmra.mxu0 %v497
        %v578 = vpop.f32.mrf.mxu0
        %v579 = vadd.f32 %v472, %v578
        %v580 = vpop.f32.mrf.mxu0
        %v581 = vadd.f32 %v472, %v580
        %582 = vmatmul.bf16.gmra.mxu0 %v500
        %v583 = vpop.f32.mrf.mxu0
        %v584 = vadd.f32 %v472, %v583
        %v585 = vpop.f32.mrf.mxu0
        %v586 = vadd.f32 %v472, %v585
        %587 = vmatmul.bf16.gmra.mxu0 %v503
        %v588 = vpop.f32.mrf.mxu0
        %v589 = vadd.f32 %v472, %v588
        %v590 = vpop.f32.mrf.mxu0
        %v591 = vadd.f32 %v472, %v590
        %592 = vmatmul.bf16.gmra.mxu0 %v506
        %v593 = vpop.f32.mrf.mxu0
        %v594 = vadd.f32 %v472, %v593
        %v595 = vpop.f32.mrf.mxu0
        %v596 = vadd.f32 %v472, %v595
        %597 = vmatmul.bf16.gmra.mxu0 %v509
        %v598 = vpop.f32.mrf.mxu0
        %v599 = vadd.f32 %v472, %v598
        %v600 = vpop.f32.mrf.mxu0
        %v601 = vadd.f32 %v472, %v600
        %602 = vmatmul.bf16.gmra.mxu0 %v512
        %v603 = vpop.f32.mrf.mxu0
        %v604 = vadd.f32 %v472, %v603
        %v605 = vpop.f32.mrf.mxu0
        %v606 = vadd.f32 %v472, %v605
        %607 = vmatmul.bf16.gmra.mxu0 %v515
        %v608 = vpop.f32.mrf.mxu0
        %v609 = vadd.f32 %v472, %v608
        %v610 = vpop.f32.mrf.mxu0
        %v611 = vadd.f32 %v472, %v610
        %612 = vmatmul.bf16.gmra.mxu0 %v518
        %v613 = vpop.f32.mrf.mxu0
        %v614 = vadd.f32 %v472, %v613
        %v615 = vpop.f32.mrf.mxu0
        %v616 = vadd.f32 %v472, %v615
        %617 = vdwg.mxu0
        %v618 = vmax.f32 %v530, 0.0
        %v619 = vmax.f32 %v579, 0.0
        %v620 = vmax.f32 %v532, 0.0
        %v621 = vmax.f32 %v581, 0.0
        %v622 = vmax.f32 %v535, 0.0
        %v623 = vmax.f32 %v584, 0.0
        %v624 = vmax.f32 %v537, 0.0
        %v625 = vmax.f32 %v586, 0.0
        %v626 = vmax.f32 %v540, 0.0
        %v627 = vmax.f32 %v589, 0.0
        %v628 = vmax.f32 %v542, 0.0
        %v629 = vmax.f32 %v591, 0.0
        %v630 = vmax.f32 %v545, 0.0
        %v631 = vmax.f32 %v594, 0.0
        %v632 = vmax.f32 %v547, 0.0
        %v633 = vmax.f32 %v596, 0.0
        %v634 = vmax.f32 %v550, 0.0
        %v635 = vmax.f32 %v599, 0.0
        %v636 = vmax.f32 %v552, 0.0
        %v637 = vmax.f32 %v601, 0.0
        %v638 = vmax.f32 %v555, 0.0
        %v639 = vmax.f32 %v604, 0.0
        %v640 = vmax.f32 %v557, 0.0
        %v641 = vmax.f32 %v606, 0.0
        %v642 = vmax.f32 %v560, 0.0
        %v643 = vmax.f32 %v609, 0.0
        %v644 = vmax.f32 %v562, 0.0
        %v645 = vmax.f32 %v611, 0.0
        %v646 = vmax.f32 %v565, 0.0
        %v647 = vmax.f32 %v614, 0.0
        %v648 = vmax.f32 %v567, 0.0
        %v649 = vmax.f32 %v616, 0.0
        %v650 = vpack.c.bf16 %v620, %v618
        %v651 = vpack.c.bf16 %v621, %v619
        %v652 = vpack.c.bf16 %v624, %v622
        %v653 = vpack.c.bf16 %v625, %v623
        %v654 = vpack.c.bf16 %v628, %v626
        %v655 = vpack.c.bf16 %v629, %v627
        %v656 = vpack.c.bf16 %v632, %v630
        %v657 = vpack.c.bf16 %v633, %v631
        %v658 = vpack.c.bf16 %v636, %v634
        %v659 = vpack.c.bf16 %v637, %v635
        %v660 = vpack.c.bf16 %v640, %v638
        %v661 = vpack.c.bf16 %v641, %v639
        %v662 = vpack.c.bf16 %v644, %v642
        %v663 = vpack.c.bf16 %v645, %v643
        %v664 = vpack.c.bf16 %v648, %v646
        %v665 = vpack.c.bf16 %v649, %v647
        %v666 = vld [vmem:[%s3] sm:$0xff]
        %v667 = vld [vmem:[%s3 + $0x8] sm:$0xff]
        %v668 = vld [vmem:[%s3 + $0x10] sm:$0xff]
        %v669 = vld [vmem:[%s3 + $0x18] sm:$0xff]
        %v670 = vld [vmem:[%s3 + $0x20] sm:$0xff]
        %v671 = vld [vmem:[%s3 + $0x28] sm:$0xff]
        %v672 = vld [vmem:[%s3 + $0x30] sm:$0xff]
        %v673 = vld [vmem:[%s3 + $0x38] sm:$0xff]
        %v674 = vld [vmem:[%s3 + $0x40] sm:$0xff]
        %v675 = vld [vmem:[%s3 + $0x48] sm:$0xff]
        %v676 = vld [vmem:[%s3 + $0x50] sm:$0xff]
        %v677 = vld [vmem:[%s3 + $0x58] sm:$0xff]
        %v678 = vld [vmem:[%s3 + $0x60] sm:$0xff]
        %v679 = vld [vmem:[%s3 + $0x68] sm:$0xff]
        %v680 = vld [vmem:[%s3 + $0x70] sm:$0xff]
        %v681 = vld [vmem:[%s3 + $0x78] sm:$0xff]
        %v682 = vld [vmem:[%s3 + $0x80] sm:$0xff]
        %v683 = vld [vmem:[%s3 + $0x88] sm:$0xff]
        %v684 = vld [vmem:[%s3 + $0x90] sm:$0xff]
        %v685 = vld [vmem:[%s3 + $0x98] sm:$0xff]
        %v686 = vld [vmem:[%s3 + $0xa0] sm:$0xff]
        %v687 = vld [vmem:[%s3 + $0xa8] sm:$0xff]
        %v688 = vld [vmem:[%s3 + $0xb0] sm:$0xff]
        %v689 = vld [vmem:[%s3 + $0xb8] sm:$0xff]
        %v690 = vld [vmem:[%s3 + $0xc0] sm:$0xff]
        %v691 = vld [vmem:[%s3 + $0xc8] sm:$0xff]
        %v692 = vld [vmem:[%s3 + $0xd0] sm:$0xff]
        %v693 = vld [vmem:[%s3 + $0xd8] sm:$0xff]
        %v694 = vld [vmem:[%s3 + $0xe0] sm:$0xff]
        %v695 = vld [vmem:[%s3 + $0xe8] sm:$0xff]
        %v696 = vld [vmem:[%s3 + $0xf0] sm:$0xff]
        %v697 = vld [vmem:[%s3 + $0xf8] sm:$0xff]
        %v698 = vld [vmem:[%s4] sm:$0x3]
        %v700 = vperm.slane %v698, 0
        %v701 = vperm.slane %v698, 1
        %v736 = vunpack.c.l.b16 %v666
        %v737 = vunpack.c.h.b16 %v666
        %v738 = vunpack.c.l.b16 %v667
        %v739 = vunpack.c.h.b16 %v667
        %v740 = vunpack.c.l.b16 %v668
        %v741 = vunpack.c.h.b16 %v668
        %v742 = vunpack.c.l.b16 %v669
        %v743 = vunpack.c.h.b16 %v669
        %v744 = vunpack.c.l.b16 %v670
        %v745 = vunpack.c.h.b16 %v670
        %v746 = vunpack.c.l.b16 %v671
        %v747 = vunpack.c.h.b16 %v671
        %v748 = vunpack.c.l.b16 %v672
        %v749 = vunpack.c.h.b16 %v672
        %v750 = vunpack.c.l.b16 %v673
        %v751 = vunpack.c.h.b16 %v673
        %v752 = vunpack.c.l.b16 %v674
        %v753 = vunpack.c.h.b16 %v674
        %v754 = vunpack.c.l.b16 %v675
        %v755 = vunpack.c.h.b16 %v675
        %v756 = vunpack.c.l.b16 %v676
        %v757 = vunpack.c.h.b16 %v676
        %v758 = vunpack.c.l.b16 %v677
        %v759 = vunpack.c.h.b16 %v677
        %v760 = vunpack.c.l.b16 %v678
        %v761 = vunpack.c.h.b16 %v678
        %v762 = vunpack.c.l.b16 %v679
        %v763 = vunpack.c.h.b16 %v679
        %v764 = vunpack.c.l.b16 %v680
        %v765 = vunpack.c.h.b16 %v680
        %v766 = vunpack.c.l.b16 %v681
        %v767 = vunpack.c.h.b16 %v681
        %v768 = vunpack.c.l.b16 %v682
        %v769 = vunpack.c.h.b16 %v682
        %v770 = vunpack.c.l.b16 %v683
        %v771 = vunpack.c.h.b16 %v683
        %v772 = vunpack.c.l.b16 %v684
        %v773 = vunpack.c.h.b16 %v684
        %v774 = vunpack.c.l.b16 %v685
        %v775 = vunpack.c.h.b16 %v685
        %v776 = vunpack.c.l.b16 %v686
        %v777 = vunpack.c.h.b16 %v686
        %v778 = vunpack.c.l.b16 %v687
        %v779 = vunpack.c.h.b16 %v687
        %v780 = vunpack.c.l.b16 %v688
        %v781 = vunpack.c.h.b16 %v688
        %v782 = vunpack.c.l.b16 %v689
        %v783 = vunpack.c.h.b16 %v689
        %v784 = vunpack.c.l.b16 %v690
        %v785 = vunpack.c.h.b16 %v690
        %v786 = vunpack.c.l.b16 %v691
        %v787 = vunpack.c.h.b16 %v691
        %v788 = vunpack.c.l.b16 %v692
        %v789 = vunpack.c.h.b16 %v692
        %v790 = vunpack.c.l.b16 %v693
        %v791 = vunpack.c.h.b16 %v693
        %v792 = vunpack.c.l.b16 %v694
        %v793 = vunpack.c.h.b16 %v694
        %v794 = vunpack.c.l.b16 %v695
        %v795 = vunpack.c.h.b16 %v695
        %v796 = vunpack.c.l.b16 %v696
        %v797 = vunpack.c.h.b16 %v696
        %v798 = vunpack.c.l.b16 %v697
        %v799 = vunpack.c.h.b16 %v697
        %v800 = vpack.c.b16 %v738, %v736
        %v801 = vpack.c.b16 %v739, %v737
        %v802 = vpack.c.b16 %v742, %v740
        %v803 = vpack.c.b16 %v743, %v741
        %v804 = vpack.c.b16 %v746, %v744
        %v805 = vpack.c.b16 %v747, %v745
        %v806 = vpack.c.b16 %v750, %v748
        %v807 = vpack.c.b16 %v751, %v749
        %v808 = vpack.c.b16 %v754, %v752
        %v809 = vpack.c.b16 %v755, %v753
        %v810 = vpack.c.b16 %v758, %v756
        %v811 = vpack.c.b16 %v759, %v757
        %v812 = vpack.c.b16 %v762, %v760
        %v813 = vpack.c.b16 %v763, %v761
        %v814 = vpack.c.b16 %v766, %v764
        %v815 = vpack.c.b16 %v767, %v765
        %v816 = vpack.c.b16 %v770, %v768
        %v817 = vpack.c.b16 %v771, %v769
        %v818 = vpack.c.b16 %v774, %v772
        %v819 = vpack.c.b16 %v775, %v773
        %v820 = vpack.c.b16 %v778, %v776
        %v821 = vpack.c.b16 %v779, %v777
        %v822 = vpack.c.b16 %v782, %v780
        %v823 = vpack.c.b16 %v783, %v781
        %v824 = vpack.c.b16 %v786, %v784
        %v825 = vpack.c.b16 %v787, %v785
        %v826 = vpack.c.b16 %v790, %v788
        %v827 = vpack.c.b16 %v791, %v789
        %v828 = vpack.c.b16 %v794, %v792
        %v829 = vpack.c.b16 %v795, %v793
        %v830 = vpack.c.b16 %v798, %v796
        %v831 = vpack.c.b16 %v799, %v797
        %864 = vmatpush.bf16.msra.mxu0 %v814
        %865 = vmatpush.bf16.msra.mxu0 %v812
        %866 = vmatpush.bf16.msra.mxu0 %v810
        %867 = vmatpush.bf16.msra.mxu0 %v808
        %868 = vmatpush.bf16.msra.mxu0 %v806
        %869 = vmatpush.bf16.msra.mxu0 %v804
        %870 = vmatpush.bf16.msra.mxu0 %v802
        %871 = vmatpush.bf16.msra.mxu0 %v800
        %872 = vmatmul.bf16.gmra.mxu0 %v650
        %v873 = vpop.f32.mrf.mxu0
        %v874 = vadd.f32 %v700, %v873
        %v875 = vpop.f32.mrf.mxu0
        %v876 = vadd.f32 %v700, %v875
        %877 = vmatmul.bf16.gmra.mxu0 %v652
        %v878 = vpop.f32.mrf.mxu0
        %v879 = vadd.f32 %v700, %v878
        %v880 = vpop.f32.mrf.mxu0
        %v881 = vadd.f32 %v700, %v880
        %882 = vmatmul.bf16.gmra.mxu0 %v654
        %v883 = vpop.f32.mrf.mxu0
        %v884 = vadd.f32 %v700, %v883
        %v885 = vpop.f32.mrf.mxu0
        %v886 = vadd.f32 %v700, %v885
        %887 = vmatmul.bf16.gmra.mxu0 %v656
        %v888 = vpop.f32.mrf.mxu0
        %v889 = vadd.f32 %v700, %v888
        %v890 = vpop.f32.mrf.mxu0
        %v891 = vadd.f32 %v700, %v890
        %892 = vmatmul.bf16.gmra.mxu0 %v658
        %v893 = vpop.f32.mrf.mxu0
        %v894 = vadd.f32 %v700, %v893
        %v895 = vpop.f32.mrf.mxu0
        %v896 = vadd.f32 %v700, %v895
        %897 = vmatmul.bf16.gmra.mxu0 %v660
        %v898 = vpop.f32.mrf.mxu0
        %v899 = vadd.f32 %v700, %v898
        %v900 = vpop.f32.mrf.mxu0
        %v901 = vadd.f32 %v700, %v900
        %902 = vmatmul.bf16.gmra.mxu0 %v662
        %v903 = vpop.f32.mrf.mxu0
        %v904 = vadd.f32 %v700, %v903
        %v905 = vpop.f32.mrf.mxu0
        %v906 = vadd.f32 %v700, %v905
        %907 = vmatmul.bf16.gmra.mxu0 %v664
        %v908 = vpop.f32.mrf.mxu0
        %v909 = vadd.f32 %v700, %v908
        %v910 = vpop.f32.mrf.mxu0
        %v911 = vadd.f32 %v700, %v910
        %912 = vdwg.mxu0
        %913 = vmatpush.bf16.msra.mxu0 %v830
        %914 = vmatpush.bf16.msra.mxu0 %v828
        %915 = vmatpush.bf16.msra.mxu0 %v826
        %916 = vmatpush.bf16.msra.mxu0 %v824
        %917 = vmatpush.bf16.msra.mxu0 %v822
        %918 = vmatpush.bf16.msra.mxu0 %v820
        %919 = vmatpush.bf16.msra.mxu0 %v818
        %920 = vmatpush.bf16.msra.mxu0 %v816
        %921 = vmatmul.bf16.gmra.mxu0 %v651
        %v922 = vpop.f32.mrf.mxu0
        %v923 = vadd.f32 %v874, %v922
        %v924 = vpop.f32.mrf.mxu0
        %v925 = vadd.f32 %v876, %v924
        %926 = vmatmul.bf16.gmra.mxu0 %v653
        %v927 = vpop.f32.mrf.mxu0
        %v928 = vadd.f32 %v879, %v927
        %v929 = vpop.f32.mrf.mxu0
        %v930 = vadd.f32 %v881, %v929
        %931 = vmatmul.bf16.gmra.mxu0 %v655
        %v932 = vpop.f32.mrf.mxu0
        %v933 = vadd.f32 %v884, %v932
        %v934 = vpop.f32.mrf.mxu0
        %v935 = vadd.f32 %v886, %v934
        %936 = vmatmul.bf16.gmra.mxu0 %v657
        %v937 = vpop.f32.mrf.mxu0
        %v938 = vadd.f32 %v889, %v937
        %v939 = vpop.f32.mrf.mxu0
        %v940 = vadd.f32 %v891, %v939
        %941 = vmatmul.bf16.gmra.mxu0 %v659
        %v942 = vpop.f32.mrf.mxu0
        %v943 = vadd.f32 %v894, %v942
        %v944 = vpop.f32.mrf.mxu0
        %v945 = vadd.f32 %v896, %v944
        %946 = vmatmul.bf16.gmra.mxu0 %v661
        %v947 = vpop.f32.mrf.mxu0
        %v948 = vadd.f32 %v899, %v947
        %v949 = vpop.f32.mrf.mxu0
        %v950 = vadd.f32 %v901, %v949
        %951 = vmatmul.bf16.gmra.mxu0 %v663
        %v952 = vpop.f32.mrf.mxu0
        %v953 = vadd.f32 %v904, %v952
        %v954 = vpop.f32.mrf.mxu0
        %v955 = vadd.f32 %v906, %v954
        %956 = vmatmul.bf16.gmra.mxu0 %v665
        %v957 = vpop.f32.mrf.mxu0
        %v958 = vadd.f32 %v909, %v957
        %v959 = vpop.f32.mrf.mxu0
        %v960 = vadd.f32 %v911, %v959
        %961 = vdwg.mxu0
        %962 = vmatpush.bf16.msra.mxu0 %v815
        %963 = vmatpush.bf16.msra.mxu0 %v813
        %964 = vmatpush.bf16.msra.mxu0 %v811
        %965 = vmatpush.bf16.msra.mxu0 %v809
        %966 = vmatpush.bf16.msra.mxu0 %v807
        %967 = vmatpush.bf16.msra.mxu0 %v805
        %968 = vmatpush.bf16.msra.mxu0 %v803
        %969 = vmatpush.bf16.msra.mxu0 %v801
        %970 = vmatmul.bf16.gmra.mxu0 %v650
        %v971 = vpop.f32.mrf.mxu0
        %v972 = vadd.f32 %v701, %v971
        %v973 = vpop.f32.mrf.mxu0
        %v974 = vadd.f32 %v701, %v973
        %975 = vmatmul.bf16.gmra.mxu0 %v652
        %v976 = vpop.f32.mrf.mxu0
        %v977 = vadd.f32 %v701, %v976
        %v978 = vpop.f32.mrf.mxu0
        %v979 = vadd.f32 %v701, %v978
        %980 = vmatmul.bf16.gmra.mxu0 %v654
        %v981 = vpop.f32.mrf.mxu0
        %v982 = vadd.f32 %v701, %v981
        %v983 = vpop.f32.mrf.mxu0
        %v984 = vadd.f32 %v701, %v983
        %985 = vmatmul.bf16.gmra.mxu0 %v656
        %v986 = vpop.f32.mrf.mxu0
        %v987 = vadd.f32 %v701, %v986
        %v988 = vpop.f32.mrf.mxu0
        %v989 = vadd.f32 %v701, %v988
        %990 = vmatmul.bf16.gmra.mxu0 %v658
        %v991 = vpop.f32.mrf.mxu0
        %v992 = vadd.f32 %v701, %v991
        %v993 = vpop.f32.mrf.mxu0
        %v994 = vadd.f32 %v701, %v993
        %995 = vmatmul.bf16.gmra.mxu0 %v660
        %v996 = vpop.f32.mrf.mxu0
        %v997 = vadd.f32 %v701, %v996
        %v998 = vpop.f32.mrf.mxu0
        %v999 = vadd.f32 %v701, %v998
        %1000 = vmatmul.bf16.gmra.mxu0 %v662
        %v1001 = vpop.f32.mrf.mxu0
        %v1002 = vadd.f32 %v701, %v1001
        %v1003 = vpop.f32.mrf.mxu0
        %v1004 = vadd.f32 %v701, %v1003
        %1005 = vmatmul.bf16.gmra.mxu0 %v664
        %v1006 = vpop.f32.mrf.mxu0
        %v1007 = vadd.f32 %v701, %v1006
        %v1008 = vpop.f32.mrf.mxu0
        %v1009 = vadd.f32 %v701, %v1008
        %1010 = vdwg.mxu0
        %1011 = vmatpush.bf16.msra.mxu0 %v831
        %1012 = vmatpush.bf16.msra.mxu0 %v829
        %1013 = vmatpush.bf16.msra.mxu0 %v827
        %1014 = vmatpush.bf16.msra.mxu0 %v825
        %1015 = vmatpush.bf16.msra.mxu0 %v823
        %1016 = vmatpush.bf16.msra.mxu0 %v821
        %1017 = vmatpush.bf16.msra.mxu0 %v819
        %1018 = vmatpush.bf16.msra.mxu0 %v817
        %1019 = vmatmul.bf16.gmra.mxu0 %v651
        %v1020 = vpop.f32.mrf.mxu0
        %v1021 = vadd.f32 %v972, %v1020
        %v1022 = vpop.f32.mrf.mxu0
        %v1023 = vadd.f32 %v974, %v1022
        %1024 = vmatmul.bf16.gmra.mxu0 %v653
        %v1025 = vpop.f32.mrf.mxu0
        %v1026 = vadd.f32 %v977, %v1025
        %v1027 = vpop.f32.mrf.mxu0
        %v1028 = vadd.f32 %v979, %v1027
        %1029 = vmatmul.bf16.gmra.mxu0 %v655
        %v1030 = vpop.f32.mrf.mxu0
        %v1031 = vadd.f32 %v982, %v1030
        %v1032 = vpop.f32.mrf.mxu0
        %v1033 = vadd.f32 %v984, %v1032
        %1034 = vmatmul.bf16.gmra.mxu0 %v657
        %v1035 = vpop.f32.mrf.mxu0
        %v1036 = vadd.f32 %v987, %v1035
        %v1037 = vpop.f32.mrf.mxu0
        %v1038 = vadd.f32 %v989, %v1037
        %1039 = vmatmul.bf16.gmra.mxu0 %v659
        %v1040 = vpop.f32.mrf.mxu0
        %v1041 = vadd.f32 %v992, %v1040
        %v1042 = vpop.f32.mrf.mxu0
        %v1043 = vadd.f32 %v994, %v1042
        %1044 = vmatmul.bf16.gmra.mxu0 %v661
        %v1045 = vpop.f32.mrf.mxu0
        %v1046 = vadd.f32 %v997, %v1045
        %v1047 = vpop.f32.mrf.mxu0
        %v1048 = vadd.f32 %v999, %v1047
        %1049 = vmatmul.bf16.gmra.mxu0 %v663
        %v1050 = vpop.f32.mrf.mxu0
        %v1051 = vadd.f32 %v1002, %v1050
        %v1052 = vpop.f32.mrf.mxu0
        %v1053 = vadd.f32 %v1004, %v1052
        %1054 = vmatmul.bf16.gmra.mxu0 %v665
        %v1055 = vpop.f32.mrf.mxu0
        %v1056 = vadd.f32 %v1007, %v1055
        %v1057 = vpop.f32.mrf.mxu0
        %v1058 = vadd.f32 %v1009, %v1057
        %1059 = vdwg.mxu0
        %v1060 = vmax.f32 %v923, 0.0
        %v1061 = vmax.f32 %v1021, 0.0
        %v1062 = vmax.f32 %v925, 0.0
        %v1063 = vmax.f32 %v1023, 0.0
        %v1064 = vmax.f32 %v928, 0.0
        %v1065 = vmax.f32 %v1026, 0.0
        %v1066 = vmax.f32 %v930, 0.0
        %v1067 = vmax.f32 %v1028, 0.0
        %v1068 = vmax.f32 %v933, 0.0
        %v1069 = vmax.f32 %v1031, 0.0
        %v1070 = vmax.f32 %v935, 0.0
        %v1071 = vmax.f32 %v1033, 0.0
        %v1072 = vmax.f32 %v938, 0.0
        %v1073 = vmax.f32 %v1036, 0.0
        %v1074 = vmax.f32 %v940, 0.0
        %v1075 = vmax.f32 %v1038, 0.0
        %v1076 = vmax.f32 %v943, 0.0
        %v1077 = vmax.f32 %v1041, 0.0
        %v1078 = vmax.f32 %v945, 0.0
        %v1079 = vmax.f32 %v1043, 0.0
        %v1080 = vmax.f32 %v948, 0.0
        %v1081 = vmax.f32 %v1046, 0.0
        %v1082 = vmax.f32 %v950, 0.0
        %v1083 = vmax.f32 %v1048, 0.0
        %v1084 = vmax.f32 %v953, 0.0
        %v1085 = vmax.f32 %v1051, 0.0
        %v1086 = vmax.f32 %v955, 0.0
        %v1087 = vmax.f32 %v1053, 0.0
        %v1088 = vmax.f32 %v958, 0.0
        %v1089 = vmax.f32 %v1056, 0.0
        %v1090 = vmax.f32 %v960, 0.0
        %v1091 = vmax.f32 %v1058, 0.0
        %v1092 = vpack.c.bf16 %v1062, %v1060
        %v1093 = vpack.c.bf16 %v1063, %v1061
        %v1094 = vpack.c.bf16 %v1066, %v1064
        %v1095 = vpack.c.bf16 %v1067, %v1065
        %v1096 = vpack.c.bf16 %v1070, %v1068
        %v1097 = vpack.c.bf16 %v1071, %v1069
        %v1098 = vpack.c.bf16 %v1074, %v1072
        %v1099 = vpack.c.bf16 %v1075, %v1073
        %v1100 = vpack.c.bf16 %v1078, %v1076
        %v1101 = vpack.c.bf16 %v1079, %v1077
        %v1102 = vpack.c.bf16 %v1082, %v1080
        %v1103 = vpack.c.bf16 %v1083, %v1081
        %v1104 = vpack.c.bf16 %v1086, %v1084
        %v1105 = vpack.c.bf16 %v1087, %v1085
        %v1106 = vpack.c.bf16 %v1090, %v1088
        %v1107 = vpack.c.bf16 %v1091, %v1089
        %v1108 = vld [vmem:[#allocation2] sm:$0xff]
        %v1109 = vld [vmem:[#allocation2 + $0x8] sm:$0xff]
        %v1110 = vld [vmem:[#allocation2 + $0x10] sm:$0xff]
        %v1111 = vld [vmem:[#allocation2 + $0x18] sm:$0xff]
        %v1112 = vld [vmem:[#allocation2 + $0x20] sm:$0xff]
        %v1113 = vld [vmem:[#allocation2 + $0x28] sm:$0xff]
        %v1114 = vld [vmem:[#allocation2 + $0x30] sm:$0xff]
        %v1115 = vld [vmem:[#allocation2 + $0x38] sm:$0xff]
        %v1116 = vld [vmem:[#allocation2 + $0x40] sm:$0xff]
        %v1117 = vld [vmem:[#allocation2 + $0x48] sm:$0xff]
        %v1118 = vld [vmem:[#allocation2 + $0x50] sm:$0xff]
        %v1119 = vld [vmem:[#allocation2 + $0x58] sm:$0xff]
        %v1120 = vld [vmem:[#allocation2 + $0x60] sm:$0xff]
        %v1121 = vld [vmem:[#allocation2 + $0x68] sm:$0xff]
        %v1122 = vld [vmem:[#allocation2 + $0x70] sm:$0xff]
        %v1123 = vld [vmem:[#allocation2 + $0x78] sm:$0xff]
        %v1124 = vld [vmem:[#allocation2 + $0x80] sm:$0xff]
        %v1125 = vld [vmem:[#allocation2 + $0x88] sm:$0xff]
        %v1126 = vld [vmem:[#allocation2 + $0x90] sm:$0xff]
        %v1127 = vld [vmem:[#allocation2 + $0x98] sm:$0xff]
        %v1128 = vld [vmem:[#allocation2 + $0xa0] sm:$0xff]
        %v1129 = vld [vmem:[#allocation2 + $0xa8] sm:$0xff]
        %v1130 = vld [vmem:[#allocation2 + $0xb0] sm:$0xff]
        %v1131 = vld [vmem:[#allocation2 + $0xb8] sm:$0xff]
        %v1132 = vld [vmem:[#allocation2 + $0xc0] sm:$0xff]
        %v1133 = vld [vmem:[#allocation2 + $0xc8] sm:$0xff]
        %v1134 = vld [vmem:[#allocation2 + $0xd0] sm:$0xff]
        %v1135 = vld [vmem:[#allocation2 + $0xd8] sm:$0xff]
        %v1136 = vld [vmem:[#allocation2 + $0xe0] sm:$0xff]
        %v1137 = vld [vmem:[#allocation2 + $0xe8] sm:$0xff]
        %v1138 = vld [vmem:[#allocation2 + $0xf0] sm:$0xff]
        %v1139 = vld [vmem:[#allocation2 + $0xf8] sm:$0xff]
        %v1140 = vld [vmem:[%s6] sm:$0x3]
        %v1142 = vperm.slane %v1140, 0
        %v1143 = vperm.slane %v1140, 1
        %v1178 = vunpack.c.l.b16 %v1108
        %v1179 = vunpack.c.h.b16 %v1108
        %v1180 = vunpack.c.l.b16 %v1109
        %v1181 = vunpack.c.h.b16 %v1109
        %v1182 = vunpack.c.l.b16 %v1110
        %v1183 = vunpack.c.h.b16 %v1110
        %v1184 = vunpack.c.l.b16 %v1111
        %v1185 = vunpack.c.h.b16 %v1111
        %v1186 = vunpack.c.l.b16 %v1112
        %v1187 = vunpack.c.h.b16 %v1112
        %v1188 = vunpack.c.l.b16 %v1113
        %v1189 = vunpack.c.h.b16 %v1113
        %v1190 = vunpack.c.l.b16 %v1114
        %v1191 = vunpack.c.h.b16 %v1114
        %v1192 = vunpack.c.l.b16 %v1115
        %v1193 = vunpack.c.h.b16 %v1115
        %v1194 = vunpack.c.l.b16 %v1116
        %v1195 = vunpack.c.h.b16 %v1116
        %v1196 = vunpack.c.l.b16 %v1117
        %v1197 = vunpack.c.h.b16 %v1117
        %v1198 = vunpack.c.l.b16 %v1118
        %v1199 = vunpack.c.h.b16 %v1118
        %v1200 = vunpack.c.l.b16 %v1119
        %v1201 = vunpack.c.h.b16 %v1119
        %v1202 = vunpack.c.l.b16 %v1120
        %v1203 = vunpack.c.h.b16 %v1120
        %v1204 = vunpack.c.l.b16 %v1121
        %v1205 = vunpack.c.h.b16 %v1121
        %v1206 = vunpack.c.l.b16 %v1122
        %v1207 = vunpack.c.h.b16 %v1122
        %v1208 = vunpack.c.l.b16 %v1123
        %v1209 = vunpack.c.h.b16 %v1123
        %v1210 = vunpack.c.l.b16 %v1124
        %v1211 = vunpack.c.h.b16 %v1124
        %v1212 = vunpack.c.l.b16 %v1125
        %v1213 = vunpack.c.h.b16 %v1125
        %v1214 = vunpack.c.l.b16 %v1126
        %v1215 = vunpack.c.h.b16 %v1126
        %v1216 = vunpack.c.l.b16 %v1127
        %v1217 = vunpack.c.h.b16 %v1127
        %v1218 = vunpack.c.l.b16 %v1128
        %v1219 = vunpack.c.h.b16 %v1128
        %v1220 = vunpack.c.l.b16 %v1129
        %v1221 = vunpack.c.h.b16 %v1129
        %v1222 = vunpack.c.l.b16 %v1130
        %v1223 = vunpack.c.h.b16 %v1130
        %v1224 = vunpack.c.l.b16 %v1131
        %v1225 = vunpack.c.h.b16 %v1131
        %v1226 = vunpack.c.l.b16 %v1132
        %v1227 = vunpack.c.h.b16 %v1132
        %v1228 = vunpack.c.l.b16 %v1133
        %v1229 = vunpack.c.h.b16 %v1133
        %v1230 = vunpack.c.l.b16 %v1134
        %v1231 = vunpack.c.h.b16 %v1134
        %v1232 = vunpack.c.l.b16 %v1135
        %v1233 = vunpack.c.h.b16 %v1135
        %v1234 = vunpack.c.l.b16 %v1136
        %v1235 = vunpack.c.h.b16 %v1136
        %v1236 = vunpack.c.l.b16 %v1137
        %v1237 = vunpack.c.h.b16 %v1137
        %v1238 = vunpack.c.l.b16 %v1138
        %v1239 = vunpack.c.h.b16 %v1138
        %v1240 = vunpack.c.l.b16 %v1139
        %v1241 = vunpack.c.h.b16 %v1139
        %v1242 = vpack.c.b16 %v1180, %v1178
        %v1243 = vpack.c.b16 %v1181, %v1179
        %v1244 = vpack.c.b16 %v1184, %v1182
        %v1245 = vpack.c.b16 %v1185, %v1183
        %v1246 = vpack.c.b16 %v1188, %v1186
        %v1247 = vpack.c.b16 %v1189, %v1187
        %v1248 = vpack.c.b16 %v1192, %v1190
        %v1249 = vpack.c.b16 %v1193, %v1191
        %v1250 = vpack.c.b16 %v1196, %v1194
        %v1251 = vpack.c.b16 %v1197, %v1195
        %v1252 = vpack.c.b16 %v1200, %v1198
        %v1253 = vpack.c.b16 %v1201, %v1199
        %v1254 = vpack.c.b16 %v1204, %v1202
        %v1255 = vpack.c.b16 %v1205, %v1203
        %v1256 = vpack.c.b16 %v1208, %v1206
        %v1257 = vpack.c.b16 %v1209, %v1207
        %v1258 = vpack.c.b16 %v1212, %v1210
        %v1259 = vpack.c.b16 %v1213, %v1211
        %v1260 = vpack.c.b16 %v1216, %v1214
        %v1261 = vpack.c.b16 %v1217, %v1215
        %v1262 = vpack.c.b16 %v1220, %v1218
        %v1263 = vpack.c.b16 %v1221, %v1219
        %v1264 = vpack.c.b16 %v1224, %v1222
        %v1265 = vpack.c.b16 %v1225, %v1223
        %v1266 = vpack.c.b16 %v1228, %v1226
        %v1267 = vpack.c.b16 %v1229, %v1227
        %v1268 = vpack.c.b16 %v1232, %v1230
        %v1269 = vpack.c.b16 %v1233, %v1231
        %v1270 = vpack.c.b16 %v1236, %v1234
        %v1271 = vpack.c.b16 %v1237, %v1235
        %v1272 = vpack.c.b16 %v1240, %v1238
        %v1273 = vpack.c.b16 %v1241, %v1239
        %1306 = vmatpush.bf16.msra.mxu0 %v1256
        %1307 = vmatpush.bf16.msra.mxu0 %v1254
        %1308 = vmatpush.bf16.msra.mxu0 %v1252
        %1309 = vmatpush.bf16.msra.mxu0 %v1250
        %1310 = vmatpush.bf16.msra.mxu0 %v1248
        %1311 = vmatpush.bf16.msra.mxu0 %v1246
        %1312 = vmatpush.bf16.msra.mxu0 %v1244
        %1313 = vmatpush.bf16.msra.mxu0 %v1242
        %1314 = vmatmul.bf16.gmra.mxu0 %v1092
        %v1315 = vpop.f32.mrf.mxu0
        %v1316 = vadd.f32 %v1142, %v1315
        %v1317 = vpop.f32.mrf.mxu0
        %v1318 = vadd.f32 %v1142, %v1317
        %1319 = vmatmul.bf16.gmra.mxu0 %v1094
        %v1320 = vpop.f32.mrf.mxu0
        %v1321 = vadd.f32 %v1142, %v1320
        %v1322 = vpop.f32.mrf.mxu0
        %v1323 = vadd.f32 %v1142, %v1322
        %1324 = vmatmul.bf16.gmra.mxu0 %v1096
        %v1325 = vpop.f32.mrf.mxu0
        %v1326 = vadd.f32 %v1142, %v1325
        %v1327 = vpop.f32.mrf.mxu0
        %v1328 = vadd.f32 %v1142, %v1327
        %1329 = vmatmul.bf16.gmra.mxu0 %v1098
        %v1330 = vpop.f32.mrf.mxu0
        %v1331 = vadd.f32 %v1142, %v1330
        %v1332 = vpop.f32.mrf.mxu0
        %v1333 = vadd.f32 %v1142, %v1332
        %1334 = vmatmul.bf16.gmra.mxu0 %v1100
        %v1335 = vpop.f32.mrf.mxu0
        %v1336 = vadd.f32 %v1142, %v1335
        %v1337 = vpop.f32.mrf.mxu0
        %v1338 = vadd.f32 %v1142, %v1337
        %1339 = vmatmul.bf16.gmra.mxu0 %v1102
        %v1340 = vpop.f32.mrf.mxu0
        %v1341 = vadd.f32 %v1142, %v1340
        %v1342 = vpop.f32.mrf.mxu0
        %v1343 = vadd.f32 %v1142, %v1342
        %1344 = vmatmul.bf16.gmra.mxu0 %v1104
        %v1345 = vpop.f32.mrf.mxu0
        %v1346 = vadd.f32 %v1142, %v1345
        %v1347 = vpop.f32.mrf.mxu0
        %v1348 = vadd.f32 %v1142, %v1347
        %1349 = vmatmul.bf16.gmra.mxu0 %v1106
        %v1350 = vpop.f32.mrf.mxu0
        %v1351 = vadd.f32 %v1142, %v1350
        %v1352 = vpop.f32.mrf.mxu0
        %v1353 = vadd.f32 %v1142, %v1352
        %1354 = vdwg.mxu0
        %1355 = vmatpush.bf16.msra.mxu0 %v1272
        %1356 = vmatpush.bf16.msra.mxu0 %v1270
        %1357 = vmatpush.bf16.msra.mxu0 %v1268
        %1358 = vmatpush.bf16.msra.mxu0 %v1266
        %1359 = vmatpush.bf16.msra.mxu0 %v1264
        %1360 = vmatpush.bf16.msra.mxu0 %v1262
        %1361 = vmatpush.bf16.msra.mxu0 %v1260
        %1362 = vmatpush.bf16.msra.mxu0 %v1258
        %1363 = vmatmul.bf16.gmra.mxu0 %v1093
        %v1364 = vpop.f32.mrf.mxu0
        %v1365 = vadd.f32 %v1316, %v1364
        %v1366 = vpop.f32.mrf.mxu0
        %v1367 = vadd.f32 %v1318, %v1366
        %1368 = vmatmul.bf16.gmra.mxu0 %v1095
        %v1369 = vpop.f32.mrf.mxu0
        %v1370 = vadd.f32 %v1321, %v1369
        %v1371 = vpop.f32.mrf.mxu0
        %v1372 = vadd.f32 %v1323, %v1371
        %1373 = vmatmul.bf16.gmra.mxu0 %v1097
        %v1374 = vpop.f32.mrf.mxu0
        %v1375 = vadd.f32 %v1326, %v1374
        %v1376 = vpop.f32.mrf.mxu0
        %v1377 = vadd.f32 %v1328, %v1376
        %1378 = vmatmul.bf16.gmra.mxu0 %v1099
        %v1379 = vpop.f32.mrf.mxu0
        %v1380 = vadd.f32 %v1331, %v1379
        %v1381 = vpop.f32.mrf.mxu0
        %v1382 = vadd.f32 %v1333, %v1381
        %1383 = vmatmul.bf16.gmra.mxu0 %v1101
        %v1384 = vpop.f32.mrf.mxu0
        %v1385 = vadd.f32 %v1336, %v1384
        %v1386 = vpop.f32.mrf.mxu0
        %v1387 = vadd.f32 %v1338, %v1386
        %1388 = vmatmul.bf16.gmra.mxu0 %v1103
        %v1389 = vpop.f32.mrf.mxu0
        %v1390 = vadd.f32 %v1341, %v1389
        %v1391 = vpop.f32.mrf.mxu0
        %v1392 = vadd.f32 %v1343, %v1391
        %1393 = vmatmul.bf16.gmra.mxu0 %v1105
        %v1394 = vpop.f32.mrf.mxu0
        %v1395 = vadd.f32 %v1346, %v1394
        %v1396 = vpop.f32.mrf.mxu0
        %v1397 = vadd.f32 %v1348, %v1396
        %1398 = vmatmul.bf16.gmra.mxu0 %v1107
        %v1399 = vpop.f32.mrf.mxu0
        %v1400 = vadd.f32 %v1351, %v1399
        %v1401 = vpop.f32.mrf.mxu0
        %v1402 = vadd.f32 %v1353, %v1401
        %1403 = vdwg.mxu0
        %1404 = vmatpush.bf16.msra.mxu0 %v1257
        %1405 = vmatpush.bf16.msra.mxu0 %v1255
        %1406 = vmatpush.bf16.msra.mxu0 %v1253
        %1407 = vmatpush.bf16.msra.mxu0 %v1251
        %1408 = vmatpush.bf16.msra.mxu0 %v1249
        %1409 = vmatpush.bf16.msra.mxu0 %v1247
        %1410 = vmatpush.bf16.msra.mxu0 %v1245
        %1411 = vmatpush.bf16.msra.mxu0 %v1243
        %1412 = vmatmul.bf16.gmra.mxu0 %v1092
        %v1413 = vpop.f32.mrf.mxu0
        %v1414 = vadd.f32 %v1143, %v1413
        %v1415 = vpop.f32.mrf.mxu0
        %v1416 = vadd.f32 %v1143, %v1415
        %1417 = vmatmul.bf16.gmra.mxu0 %v1094
        %v1418 = vpop.f32.mrf.mxu0
        %v1419 = vadd.f32 %v1143, %v1418
        %v1420 = vpop.f32.mrf.mxu0
        %v1421 = vadd.f32 %v1143, %v1420
        %1422 = vmatmul.bf16.gmra.mxu0 %v1096
        %v1423 = vpop.f32.mrf.mxu0
        %v1424 = vadd.f32 %v1143, %v1423
        %v1425 = vpop.f32.mrf.mxu0
        %v1426 = vadd.f32 %v1143, %v1425
        %1427 = vmatmul.bf16.gmra.mxu0 %v1098
        %v1428 = vpop.f32.mrf.mxu0
        %v1429 = vadd.f32 %v1143, %v1428
        %v1430 = vpop.f32.mrf.mxu0
        %v1431 = vadd.f32 %v1143, %v1430
        %1432 = vmatmul.bf16.gmra.mxu0 %v1100
        %v1433 = vpop.f32.mrf.mxu0
        %v1434 = vadd.f32 %v1143, %v1433
        %v1435 = vpop.f32.mrf.mxu0
        %v1436 = vadd.f32 %v1143, %v1435
        %1437 = vmatmul.bf16.gmra.mxu0 %v1102
        %v1438 = vpop.f32.mrf.mxu0
        %v1439 = vadd.f32 %v1143, %v1438
        %v1440 = vpop.f32.mrf.mxu0
        %v1441 = vadd.f32 %v1143, %v1440
        %1442 = vmatmul.bf16.gmra.mxu0 %v1104
        %v1443 = vpop.f32.mrf.mxu0
        %v1444 = vadd.f32 %v1143, %v1443
        %v1445 = vpop.f32.mrf.mxu0
        %v1446 = vadd.f32 %v1143, %v1445
        %1447 = vmatmul.bf16.gmra.mxu0 %v1106
        %v1448 = vpop.f32.mrf.mxu0
        %v1449 = vadd.f32 %v1143, %v1448
        %v1450 = vpop.f32.mrf.mxu0
        %v1451 = vadd.f32 %v1143, %v1450
        %1452 = vdwg.mxu0
        %1453 = vmatpush.bf16.msra.mxu0 %v1273
        %1454 = vmatpush.bf16.msra.mxu0 %v1271
        %1455 = vmatpush.bf16.msra.mxu0 %v1269
        %1456 = vmatpush.bf16.msra.mxu0 %v1267
        %1457 = vmatpush.bf16.msra.mxu0 %v1265
        %1458 = vmatpush.bf16.msra.mxu0 %v1263
        %1459 = vmatpush.bf16.msra.mxu0 %v1261
        %1460 = vmatpush.bf16.msra.mxu0 %v1259
        %1461 = vmatmul.bf16.gmra.mxu0 %v1093
        %v1462 = vpop.f32.mrf.mxu0
        %v1463 = vadd.f32 %v1414, %v1462
        %v1464 = vpop.f32.mrf.mxu0
        %v1465 = vadd.f32 %v1416, %v1464
        %1466 = vmatmul.bf16.gmra.mxu0 %v1095
        %v1467 = vpop.f32.mrf.mxu0
        %v1468 = vadd.f32 %v1419, %v1467
        %v1469 = vpop.f32.mrf.mxu0
        %v1470 = vadd.f32 %v1421, %v1469
        %1471 = vmatmul.bf16.gmra.mxu0 %v1097
        %v1472 = vpop.f32.mrf.mxu0
        %v1473 = vadd.f32 %v1424, %v1472
        %v1474 = vpop.f32.mrf.mxu0
        %v1475 = vadd.f32 %v1426, %v1474
        %1476 = vmatmul.bf16.gmra.mxu0 %v1099
        %v1477 = vpop.f32.mrf.mxu0
        %v1478 = vadd.f32 %v1429, %v1477
        %v1479 = vpop.f32.mrf.mxu0
        %v1480 = vadd.f32 %v1431, %v1479
        %1481 = vmatmul.bf16.gmra.mxu0 %v1101
        %v1482 = vpop.f32.mrf.mxu0
        %v1483 = vadd.f32 %v1434, %v1482
        %v1484 = vpop.f32.mrf.mxu0
        %v1485 = vadd.f32 %v1436, %v1484
        %1486 = vmatmul.bf16.gmra.mxu0 %v1103
        %v1487 = vpop.f32.mrf.mxu0
        %v1488 = vadd.f32 %v1439, %v1487
        %v1489 = vpop.f32.mrf.mxu0
        %v1490 = vadd.f32 %v1441, %v1489
        %1491 = vmatmul.bf16.gmra.mxu0 %v1105
        %v1492 = vpop.f32.mrf.mxu0
        %v1493 = vadd.f32 %v1444, %v1492
        %v1494 = vpop.f32.mrf.mxu0
        %v1495 = vadd.f32 %v1446, %v1494
        %1496 = vmatmul.bf16.gmra.mxu0 %v1107
        %v1497 = vpop.f32.mrf.mxu0
        %v1498 = vadd.f32 %v1449, %v1497
        %v1499 = vpop.f32.mrf.mxu0
        %v1500 = vadd.f32 %v1451, %v1499
        %1501 = vdwg.mxu0
        %v1502 = vmax.f32 %v1365, 0.0
        %v1503 = vmax.f32 %v1463, 0.0
        %v1504 = vmax.f32 %v1367, 0.0
        %v1505 = vmax.f32 %v1465, 0.0
        %v1506 = vmax.f32 %v1370, 0.0
        %v1507 = vmax.f32 %v1468, 0.0
        %v1508 = vmax.f32 %v1372, 0.0
        %v1509 = vmax.f32 %v1470, 0.0
        %v1510 = vmax.f32 %v1375, 0.0
        %v1511 = vmax.f32 %v1473, 0.0
        %v1512 = vmax.f32 %v1377, 0.0
        %v1513 = vmax.f32 %v1475, 0.0
        %v1514 = vmax.f32 %v1380, 0.0
        %v1515 = vmax.f32 %v1478, 0.0
        %v1516 = vmax.f32 %v1382, 0.0
        %v1517 = vmax.f32 %v1480, 0.0
        %v1518 = vmax.f32 %v1385, 0.0
        %v1519 = vmax.f32 %v1483, 0.0
        %v1520 = vmax.f32 %v1387, 0.0
        %v1521 = vmax.f32 %v1485, 0.0
        %v1522 = vmax.f32 %v1390, 0.0
        %v1523 = vmax.f32 %v1488, 0.0
        %v1524 = vmax.f32 %v1392, 0.0
        %v1525 = vmax.f32 %v1490, 0.0
        %v1526 = vmax.f32 %v1395, 0.0
        %v1527 = vmax.f32 %v1493, 0.0
        %v1528 = vmax.f32 %v1397, 0.0
        %v1529 = vmax.f32 %v1495, 0.0
        %v1530 = vmax.f32 %v1400, 0.0
        %v1531 = vmax.f32 %v1498, 0.0
        %v1532 = vmax.f32 %v1402, 0.0
        %v1533 = vmax.f32 %v1500, 0.0
        %v1534 = vpack.c.bf16 %v1504, %v1502
        %v1535 = vpack.c.bf16 %v1505, %v1503
        %v1536 = vpack.c.bf16 %v1508, %v1506
        %v1537 = vpack.c.bf16 %v1509, %v1507
        %v1538 = vpack.c.bf16 %v1512, %v1510
        %v1539 = vpack.c.bf16 %v1513, %v1511
        %v1540 = vpack.c.bf16 %v1516, %v1514
        %v1541 = vpack.c.bf16 %v1517, %v1515
        %v1542 = vpack.c.bf16 %v1520, %v1518
        %v1543 = vpack.c.bf16 %v1521, %v1519
        %v1544 = vpack.c.bf16 %v1524, %v1522
        %v1545 = vpack.c.bf16 %v1525, %v1523
        %v1546 = vpack.c.bf16 %v1528, %v1526
        %v1547 = vpack.c.bf16 %v1529, %v1527
        %v1548 = vpack.c.bf16 %v1532, %v1530
        %v1549 = vpack.c.bf16 %v1533, %v1531
        %v1550 = vld [vmem:[#allocation4] sm:$0xff]
        %v1551 = vld [vmem:[#allocation4 + $0x8] sm:$0xff]
        %v1552 = vld [vmem:[#allocation4 + $0x10] sm:$0xff]
        %v1553 = vld [vmem:[#allocation4 + $0x18] sm:$0xff]
        %v1554 = vld [vmem:[#allocation4 + $0x20] sm:$0xff]
        %v1555 = vld [vmem:[#allocation4 + $0x28] sm:$0xff]
        %v1556 = vld [vmem:[#allocation4 + $0x30] sm:$0xff]
        %v1557 = vld [vmem:[#allocation4 + $0x38] sm:$0xff]
        %v1558 = vld [vmem:[#allocation4 + $0x40] sm:$0xff]
        %v1559 = vld [vmem:[#allocation4 + $0x48] sm:$0xff]
        %v1560 = vld [vmem:[#allocation4 + $0x50] sm:$0xff]
        %v1561 = vld [vmem:[#allocation4 + $0x58] sm:$0xff]
        %v1562 = vld [vmem:[#allocation4 + $0x60] sm:$0xff]
        %v1563 = vld [vmem:[#allocation4 + $0x68] sm:$0xff]
        %v1564 = vld [vmem:[#allocation4 + $0x70] sm:$0xff]
        %v1565 = vld [vmem:[#allocation4 + $0x78] sm:$0xff]
        %v1566 = vld [vmem:[#allocation4 + $0x80] sm:$0xff]
        %v1567 = vld [vmem:[#allocation4 + $0x88] sm:$0xff]
        %v1568 = vld [vmem:[#allocation4 + $0x90] sm:$0xff]
        %v1569 = vld [vmem:[#allocation4 + $0x98] sm:$0xff]
        %v1570 = vld [vmem:[#allocation4 + $0xa0] sm:$0xff]
        %v1571 = vld [vmem:[#allocation4 + $0xa8] sm:$0xff]
        %v1572 = vld [vmem:[#allocation4 + $0xb0] sm:$0xff]
        %v1573 = vld [vmem:[#allocation4 + $0xb8] sm:$0xff]
        %v1574 = vld [vmem:[#allocation4 + $0xc0] sm:$0xff]
        %v1575 = vld [vmem:[#allocation4 + $0xc8] sm:$0xff]
        %v1576 = vld [vmem:[#allocation4 + $0xd0] sm:$0xff]
        %v1577 = vld [vmem:[#allocation4 + $0xd8] sm:$0xff]
        %v1578 = vld [vmem:[#allocation4 + $0xe0] sm:$0xff]
        %v1579 = vld [vmem:[#allocation4 + $0xe8] sm:$0xff]
        %v1580 = vld [vmem:[#allocation4 + $0xf0] sm:$0xff]
        %v1581 = vld [vmem:[#allocation4 + $0xf8] sm:$0xff]
        %v1582 = vld [vmem:[%s8] sm:$0x3]
        %v1584 = vperm.slane %v1582, 0
        %v1585 = vperm.slane %v1582, 1
        %v1620 = vunpack.c.l.b16 %v1550
        %v1621 = vunpack.c.h.b16 %v1550
        %v1622 = vunpack.c.l.b16 %v1551
        %v1623 = vunpack.c.h.b16 %v1551
        %v1624 = vunpack.c.l.b16 %v1552
        %v1625 = vunpack.c.h.b16 %v1552
        %v1626 = vunpack.c.l.b16 %v1553
        %v1627 = vunpack.c.h.b16 %v1553
        %v1628 = vunpack.c.l.b16 %v1554
        %v1629 = vunpack.c.h.b16 %v1554
        %v1630 = vunpack.c.l.b16 %v1555
        %v1631 = vunpack.c.h.b16 %v1555
        %v1632 = vunpack.c.l.b16 %v1556
        %v1633 = vunpack.c.h.b16 %v1556
        %v1634 = vunpack.c.l.b16 %v1557
        %v1635 = vunpack.c.h.b16 %v1557
        %v1636 = vunpack.c.l.b16 %v1558
        %v1637 = vunpack.c.h.b16 %v1558
        %v1638 = vunpack.c.l.b16 %v1559
        %v1639 = vunpack.c.h.b16 %v1559
        %v1640 = vunpack.c.l.b16 %v1560
        %v1641 = vunpack.c.h.b16 %v1560
        %v1642 = vunpack.c.l.b16 %v1561
        %v1643 = vunpack.c.h.b16 %v1561
        %v1644 = vunpack.c.l.b16 %v1562
        %v1645 = vunpack.c.h.b16 %v1562
        %v1646 = vunpack.c.l.b16 %v1563
        %v1647 = vunpack.c.h.b16 %v1563
        %v1648 = vunpack.c.l.b16 %v1564
        %v1649 = vunpack.c.h.b16 %v1564
        %v1650 = vunpack.c.l.b16 %v1565
        %v1651 = vunpack.c.h.b16 %v1565
        %v1652 = vunpack.c.l.b16 %v1566
        %v1653 = vunpack.c.h.b16 %v1566
        %v1654 = vunpack.c.l.b16 %v1567
        %v1655 = vunpack.c.h.b16 %v1567
        %v1656 = vunpack.c.l.b16 %v1568
        %v1657 = vunpack.c.h.b16 %v1568
        %v1658 = vunpack.c.l.b16 %v1569
        %v1659 = vunpack.c.h.b16 %v1569
        %v1660 = vunpack.c.l.b16 %v1570
        %v1661 = vunpack.c.h.b16 %v1570
        %v1662 = vunpack.c.l.b16 %v1571
        %v1663 = vunpack.c.h.b16 %v1571
        %v1664 = vunpack.c.l.b16 %v1572
        %v1665 = vunpack.c.h.b16 %v1572
        %v1666 = vunpack.c.l.b16 %v1573
        %v1667 = vunpack.c.h.b16 %v1573
        %v1668 = vunpack.c.l.b16 %v1574
        %v1669 = vunpack.c.h.b16 %v1574
        %v1670 = vunpack.c.l.b16 %v1575
        %v1671 = vunpack.c.h.b16 %v1575
        %v1672 = vunpack.c.l.b16 %v1576
        %v1673 = vunpack.c.h.b16 %v1576
        %v1674 = vunpack.c.l.b16 %v1577
        %v1675 = vunpack.c.h.b16 %v1577
        %v1676 = vunpack.c.l.b16 %v1578
        %v1677 = vunpack.c.h.b16 %v1578
        %v1678 = vunpack.c.l.b16 %v1579
        %v1679 = vunpack.c.h.b16 %v1579
        %v1680 = vunpack.c.l.b16 %v1580
        %v1681 = vunpack.c.h.b16 %v1580
        %v1682 = vunpack.c.l.b16 %v1581
        %v1683 = vunpack.c.h.b16 %v1581
        %v1684 = vpack.c.b16 %v1622, %v1620
        %v1685 = vpack.c.b16 %v1623, %v1621
        %v1686 = vpack.c.b16 %v1626, %v1624
        %v1687 = vpack.c.b16 %v1627, %v1625
        %v1688 = vpack.c.b16 %v1630, %v1628
        %v1689 = vpack.c.b16 %v1631, %v1629
        %v1690 = vpack.c.b16 %v1634, %v1632
        %v1691 = vpack.c.b16 %v1635, %v1633
        %v1692 = vpack.c.b16 %v1638, %v1636
        %v1693 = vpack.c.b16 %v1639, %v1637
        %v1694 = vpack.c.b16 %v1642, %v1640
        %v1695 = vpack.c.b16 %v1643, %v1641
        %v1696 = vpack.c.b16 %v1646, %v1644
        %v1697 = vpack.c.b16 %v1647, %v1645
        %v1698 = vpack.c.b16 %v1650, %v1648
        %v1699 = vpack.c.b16 %v1651, %v1649
        %v1700 = vpack.c.b16 %v1654, %v1652
        %v1701 = vpack.c.b16 %v1655, %v1653
        %v1702 = vpack.c.b16 %v1658, %v1656
        %v1703 = vpack.c.b16 %v1659, %v1657
        %v1704 = vpack.c.b16 %v1662, %v1660
        %v1705 = vpack.c.b16 %v1663, %v1661
        %v1706 = vpack.c.b16 %v1666, %v1664
        %v1707 = vpack.c.b16 %v1667, %v1665
        %v1708 = vpack.c.b16 %v1670, %v1668
        %v1709 = vpack.c.b16 %v1671, %v1669
        %v1710 = vpack.c.b16 %v1674, %v1672
        %v1711 = vpack.c.b16 %v1675, %v1673
        %v1712 = vpack.c.b16 %v1678, %v1676
        %v1713 = vpack.c.b16 %v1679, %v1677
        %v1714 = vpack.c.b16 %v1682, %v1680
        %v1715 = vpack.c.b16 %v1683, %v1681
        %1748 = vmatpush.bf16.msra.mxu0 %v1698
        %1749 = vmatpush.bf16.msra.mxu0 %v1696
        %1750 = vmatpush.bf16.msra.mxu0 %v1694
        %1751 = vmatpush.bf16.msra.mxu0 %v1692
        %1752 = vmatpush.bf16.msra.mxu0 %v1690
        %1753 = vmatpush.bf16.msra.mxu0 %v1688
        %1754 = vmatpush.bf16.msra.mxu0 %v1686
        %1755 = vmatpush.bf16.msra.mxu0 %v1684
        %1756 = vmatmul.bf16.gmra.mxu0 %v1534
        %v1757 = vpop.f32.mrf.mxu0
        %v1758 = vadd.f32 %v1584, %v1757
        %v1759 = vpop.f32.mrf.mxu0
        %v1760 = vadd.f32 %v1584, %v1759
        %1761 = vmatmul.bf16.gmra.mxu0 %v1536
        %v1762 = vpop.f32.mrf.mxu0
        %v1763 = vadd.f32 %v1584, %v1762
        %v1764 = vpop.f32.mrf.mxu0
        %v1765 = vadd.f32 %v1584, %v1764
        %1766 = vmatmul.bf16.gmra.mxu0 %v1538
        %v1767 = vpop.f32.mrf.mxu0
        %v1768 = vadd.f32 %v1584, %v1767
        %v1769 = vpop.f32.mrf.mxu0
        %v1770 = vadd.f32 %v1584, %v1769
        %1771 = vmatmul.bf16.gmra.mxu0 %v1540
        %v1772 = vpop.f32.mrf.mxu0
        %v1773 = vadd.f32 %v1584, %v1772
        %v1774 = vpop.f32.mrf.mxu0
        %v1775 = vadd.f32 %v1584, %v1774
        %1776 = vmatmul.bf16.gmra.mxu0 %v1542
        %v1777 = vpop.f32.mrf.mxu0
        %v1778 = vadd.f32 %v1584, %v1777
        %v1779 = vpop.f32.mrf.mxu0
        %v1780 = vadd.f32 %v1584, %v1779
        %1781 = vmatmul.bf16.gmra.mxu0 %v1544
        %v1782 = vpop.f32.mrf.mxu0
        %v1783 = vadd.f32 %v1584, %v1782
        %v1784 = vpop.f32.mrf.mxu0
        %v1785 = vadd.f32 %v1584, %v1784
        %1786 = vmatmul.bf16.gmra.mxu0 %v1546
        %v1787 = vpop.f32.mrf.mxu0
        %v1788 = vadd.f32 %v1584, %v1787
        %v1789 = vpop.f32.mrf.mxu0
        %v1790 = vadd.f32 %v1584, %v1789
        %1791 = vmatmul.bf16.gmra.mxu0 %v1548
        %v1792 = vpop.f32.mrf.mxu0
        %v1793 = vadd.f32 %v1584, %v1792
        %v1794 = vpop.f32.mrf.mxu0
        %v1795 = vadd.f32 %v1584, %v1794
        %1796 = vdwg.mxu0
        %1797 = vmatpush.bf16.msra.mxu0 %v1714
        %1798 = vmatpush.bf16.msra.mxu0 %v1712
        %1799 = vmatpush.bf16.msra.mxu0 %v1710
        %1800 = vmatpush.bf16.msra.mxu0 %v1708
        %1801 = vmatpush.bf16.msra.mxu0 %v1706
        %1802 = vmatpush.bf16.msra.mxu0 %v1704
        %1803 = vmatpush.bf16.msra.mxu0 %v1702
        %1804 = vmatpush.bf16.msra.mxu0 %v1700
        %1805 = vmatmul.bf16.gmra.mxu0 %v1535
        %v1806 = vpop.f32.mrf.mxu0
        %v1807 = vadd.f32 %v1758, %v1806
        %v1808 = vpop.f32.mrf.mxu0
        %v1809 = vadd.f32 %v1760, %v1808
        %1810 = vmatmul.bf16.gmra.mxu0 %v1537
        %v1811 = vpop.f32.mrf.mxu0
        %v1812 = vadd.f32 %v1763, %v1811
        %v1813 = vpop.f32.mrf.mxu0
        %v1814 = vadd.f32 %v1765, %v1813
        %1815 = vmatmul.bf16.gmra.mxu0 %v1539
        %v1816 = vpop.f32.mrf.mxu0
        %v1817 = vadd.f32 %v1768, %v1816
        %v1818 = vpop.f32.mrf.mxu0
        %v1819 = vadd.f32 %v1770, %v1818
        %1820 = vmatmul.bf16.gmra.mxu0 %v1541
        %v1821 = vpop.f32.mrf.mxu0
        %v1822 = vadd.f32 %v1773, %v1821
        %v1823 = vpop.f32.mrf.mxu0
        %v1824 = vadd.f32 %v1775, %v1823
        %1825 = vmatmul.bf16.gmra.mxu0 %v1543
        %v1826 = vpop.f32.mrf.mxu0
        %v1827 = vadd.f32 %v1778, %v1826
        %v1828 = vpop.f32.mrf.mxu0
        %v1829 = vadd.f32 %v1780, %v1828
        %1830 = vmatmul.bf16.gmra.mxu0 %v1545
        %v1831 = vpop.f32.mrf.mxu0
        %v1832 = vadd.f32 %v1783, %v1831
        %v1833 = vpop.f32.mrf.mxu0
        %v1834 = vadd.f32 %v1785, %v1833
        %1835 = vmatmul.bf16.gmra.mxu0 %v1547
        %v1836 = vpop.f32.mrf.mxu0
        %v1837 = vadd.f32 %v1788, %v1836
        %v1838 = vpop.f32.mrf.mxu0
        %v1839 = vadd.f32 %v1790, %v1838
        %1840 = vmatmul.bf16.gmra.mxu0 %v1549
        %v1841 = vpop.f32.mrf.mxu0
        %v1842 = vadd.f32 %v1793, %v1841
        %v1843 = vpop.f32.mrf.mxu0
        %v1844 = vadd.f32 %v1795, %v1843
        %1845 = vdwg.mxu0
        %1846 = vmatpush.bf16.msra.mxu0 %v1699
        %1847 = vmatpush.bf16.msra.mxu0 %v1697
        %1848 = vmatpush.bf16.msra.mxu0 %v1695
        %1849 = vmatpush.bf16.msra.mxu0 %v1693
        %1850 = vmatpush.bf16.msra.mxu0 %v1691
        %1851 = vmatpush.bf16.msra.mxu0 %v1689
        %1852 = vmatpush.bf16.msra.mxu0 %v1687
        %1853 = vmatpush.bf16.msra.mxu0 %v1685
        %1854 = vmatmul.bf16.gmra.mxu0 %v1534
        %v1855 = vpop.f32.mrf.mxu0
        %v1856 = vadd.f32 %v1585, %v1855
        %v1857 = vpop.f32.mrf.mxu0
        %v1858 = vadd.f32 %v1585, %v1857
        %1859 = vmatmul.bf16.gmra.mxu0 %v1536
        %v1860 = vpop.f32.mrf.mxu0
        %v1861 = vadd.f32 %v1585, %v1860
        %v1862 = vpop.f32.mrf.mxu0
        %v1863 = vadd.f32 %v1585, %v1862
        %1864 = vmatmul.bf16.gmra.mxu0 %v1538
        %v1865 = vpop.f32.mrf.mxu0
        %v1866 = vadd.f32 %v1585, %v1865
        %v1867 = vpop.f32.mrf.mxu0
        %v1868 = vadd.f32 %v1585, %v1867
        %1869 = vmatmul.bf16.gmra.mxu0 %v1540
        %v1870 = vpop.f32.mrf.mxu0
        %v1871 = vadd.f32 %v1585, %v1870
        %v1872 = vpop.f32.mrf.mxu0
        %v1873 = vadd.f32 %v1585, %v1872
        %1874 = vmatmul.bf16.gmra.mxu0 %v1542
        %v1875 = vpop.f32.mrf.mxu0
        %v1876 = vadd.f32 %v1585, %v1875
        %v1877 = vpop.f32.mrf.mxu0
        %v1878 = vadd.f32 %v1585, %v1877
        %1879 = vmatmul.bf16.gmra.mxu0 %v1544
        %v1880 = vpop.f32.mrf.mxu0
        %v1881 = vadd.f32 %v1585, %v1880
        %v1882 = vpop.f32.mrf.mxu0
        %v1883 = vadd.f32 %v1585, %v1882
        %1884 = vmatmul.bf16.gmra.mxu0 %v1546
        %v1885 = vpop.f32.mrf.mxu0
        %v1886 = vadd.f32 %v1585, %v1885
        %v1887 = vpop.f32.mrf.mxu0
        %v1888 = vadd.f32 %v1585, %v1887
        %1889 = vmatmul.bf16.gmra.mxu0 %v1548
        %v1890 = vpop.f32.mrf.mxu0
        %v1891 = vadd.f32 %v1585, %v1890
        %v1892 = vpop.f32.mrf.mxu0
        %v1893 = vadd.f32 %v1585, %v1892
        %1894 = vdwg.mxu0
        %1895 = vmatpush.bf16.msra.mxu0 %v1715
        %1896 = vmatpush.bf16.msra.mxu0 %v1713
        %1897 = vmatpush.bf16.msra.mxu0 %v1711
        %1898 = vmatpush.bf16.msra.mxu0 %v1709
        %1899 = vmatpush.bf16.msra.mxu0 %v1707
        %1900 = vmatpush.bf16.msra.mxu0 %v1705
        %1901 = vmatpush.bf16.msra.mxu0 %v1703
        %1902 = vmatpush.bf16.msra.mxu0 %v1701
        %1903 = vmatmul.bf16.gmra.mxu0 %v1535
        %v1904 = vpop.f32.mrf.mxu0
        %v1905 = vadd.f32 %v1856, %v1904
        %v1906 = vpop.f32.mrf.mxu0
        %v1907 = vadd.f32 %v1858, %v1906
        %1908 = vmatmul.bf16.gmra.mxu0 %v1537
        %v1909 = vpop.f32.mrf.mxu0
        %v1910 = vadd.f32 %v1861, %v1909
        %v1911 = vpop.f32.mrf.mxu0
        %v1912 = vadd.f32 %v1863, %v1911
        %1913 = vmatmul.bf16.gmra.mxu0 %v1539
        %v1914 = vpop.f32.mrf.mxu0
        %v1915 = vadd.f32 %v1866, %v1914
        %v1916 = vpop.f32.mrf.mxu0
        %v1917 = vadd.f32 %v1868, %v1916
        %1918 = vmatmul.bf16.gmra.mxu0 %v1541
        %v1919 = vpop.f32.mrf.mxu0
        %v1920 = vadd.f32 %v1871, %v1919
        %v1921 = vpop.f32.mrf.mxu0
        %v1922 = vadd.f32 %v1873, %v1921
        %1923 = vmatmul.bf16.gmra.mxu0 %v1543
        %v1924 = vpop.f32.mrf.mxu0
        %v1925 = vadd.f32 %v1876, %v1924
        %v1926 = vpop.f32.mrf.mxu0
        %v1927 = vadd.f32 %v1878, %v1926
        %1928 = vmatmul.bf16.gmra.mxu0 %v1545
        %v1929 = vpop.f32.mrf.mxu0
        %v1930 = vadd.f32 %v1881, %v1929
        %v1931 = vpop.f32.mrf.mxu0
        %v1932 = vadd.f32 %v1883, %v1931
        %1933 = vmatmul.bf16.gmra.mxu0 %v1547
        %v1934 = vpop.f32.mrf.mxu0
        %v1935 = vadd.f32 %v1886, %v1934
        %v1936 = vpop.f32.mrf.mxu0
        %v1937 = vadd.f32 %v1888, %v1936
        %1938 = vmatmul.bf16.gmra.mxu0 %v1549
        %v1939 = vpop.f32.mrf.mxu0
        %v1940 = vadd.f32 %v1891, %v1939
        %v1941 = vpop.f32.mrf.mxu0
        %v1942 = vadd.f32 %v1893, %v1941
        %1943 = vdwg.mxu0
        %v1944 = vmax.f32 %v1807, 0.0
        %v1945 = vmax.f32 %v1905, 0.0
        %v1946 = vmax.f32 %v1809, 0.0
        %v1947 = vmax.f32 %v1907, 0.0
        %v1948 = vmax.f32 %v1812, 0.0
        %v1949 = vmax.f32 %v1910, 0.0
        %v1950 = vmax.f32 %v1814, 0.0
        %v1951 = vmax.f32 %v1912, 0.0
        %v1952 = vmax.f32 %v1817, 0.0
        %v1953 = vmax.f32 %v1915, 0.0
        %v1954 = vmax.f32 %v1819, 0.0
        %v1955 = vmax.f32 %v1917, 0.0
        %v1956 = vmax.f32 %v1822, 0.0
        %v1957 = vmax.f32 %v1920, 0.0
        %v1958 = vmax.f32 %v1824, 0.0
        %v1959 = vmax.f32 %v1922, 0.0
        %v1960 = vmax.f32 %v1827, 0.0
        %v1961 = vmax.f32 %v1925, 0.0
        %v1962 = vmax.f32 %v1829, 0.0
        %v1963 = vmax.f32 %v1927, 0.0
        %v1964 = vmax.f32 %v1832, 0.0
        %v1965 = vmax.f32 %v1930, 0.0
        %v1966 = vmax.f32 %v1834, 0.0
        %v1967 = vmax.f32 %v1932, 0.0
        %v1968 = vmax.f32 %v1837, 0.0
        %v1969 = vmax.f32 %v1935, 0.0
        %v1970 = vmax.f32 %v1839, 0.0
        %v1971 = vmax.f32 %v1937, 0.0
        %v1972 = vmax.f32 %v1842, 0.0
        %v1973 = vmax.f32 %v1940, 0.0
        %v1974 = vmax.f32 %v1844, 0.0
        %v1975 = vmax.f32 %v1942, 0.0
        %v1976 = vpack.c.bf16 %v1946, %v1944
        %v1977 = vpack.c.bf16 %v1947, %v1945
        %v1978 = vpack.c.bf16 %v1950, %v1948
        %v1979 = vpack.c.bf16 %v1951, %v1949
        %v1980 = vpack.c.bf16 %v1954, %v1952
        %v1981 = vpack.c.bf16 %v1955, %v1953
        %v1982 = vpack.c.bf16 %v1958, %v1956
        %v1983 = vpack.c.bf16 %v1959, %v1957
        %v1984 = vpack.c.bf16 %v1962, %v1960
        %v1985 = vpack.c.bf16 %v1963, %v1961
        %v1986 = vpack.c.bf16 %v1966, %v1964
        %v1987 = vpack.c.bf16 %v1967, %v1965
        %v1988 = vpack.c.bf16 %v1970, %v1968
        %v1989 = vpack.c.bf16 %v1971, %v1969
        %v1990 = vpack.c.bf16 %v1974, %v1972
        %v1991 = vpack.c.bf16 %v1975, %v1973
        %v1992 = vld [vmem:[#allocation6] sm:$0xf]
        %v1993 = vld [vmem:[#allocation6 + $0x4] sm:$0xf]
        %v1994 = vld [vmem:[#allocation6 + $0x8] sm:$0xf]
        %v1995 = vld [vmem:[#allocation6 + $0xc] sm:$0xf]
        %v1996 = vld [vmem:[#allocation6 + $0x10] sm:$0xf]
        %v1997 = vld [vmem:[#allocation6 + $0x14] sm:$0xf]
        %v1998 = vld [vmem:[#allocation6 + $0x18] sm:$0xf]
        %v1999 = vld [vmem:[#allocation6 + $0x1c] sm:$0xf]
        %v2000 = vld [vmem:[#allocation6 + $0x20] sm:$0xf]
        %v2001 = vld [vmem:[#allocation6 + $0x24] sm:$0xf]
        %v2002 = vld [vmem:[#allocation6 + $0x28] sm:$0xf]
        %v2003 = vld [vmem:[#allocation6 + $0x2c] sm:$0xf]
        %v2004 = vld [vmem:[#allocation6 + $0x30] sm:$0xf]
        %v2005 = vld [vmem:[#allocation6 + $0x34] sm:$0xf]
        %v2006 = vld [vmem:[#allocation6 + $0x38] sm:$0xf]
        %v2007 = vld [vmem:[#allocation6 + $0x3c] sm:$0xf]
        %v2008 = vld [vmem:[#allocation6 + $0x40] sm:$0xf]
        %v2009 = vld [vmem:[#allocation6 + $0x44] sm:$0xf]
        %v2010 = vld [vmem:[#allocation6 + $0x48] sm:$0xf]
        %v2011 = vld [vmem:[#allocation6 + $0x4c] sm:$0xf]
        %v2012 = vld [vmem:[#allocation6 + $0x50] sm:$0xf]
        %v2013 = vld [vmem:[#allocation6 + $0x54] sm:$0xf]
        %v2014 = vld [vmem:[#allocation6 + $0x58] sm:$0xf]
        %v2015 = vld [vmem:[#allocation6 + $0x5c] sm:$0xf]
        %v2016 = vld [vmem:[#allocation6 + $0x60] sm:$0xf]
        %v2017 = vld [vmem:[#allocation6 + $0x64] sm:$0xf]
        %v2018 = vld [vmem:[#allocation6 + $0x68] sm:$0xf]
        %v2019 = vld [vmem:[#allocation6 + $0x6c] sm:$0xf]
        %v2020 = vld [vmem:[#allocation6 + $0x70] sm:$0xf]
        %v2021 = vld [vmem:[#allocation6 + $0x74] sm:$0xf]
        %v2022 = vld [vmem:[#allocation6 + $0x78] sm:$0xf]
        %v2023 = vld [vmem:[#allocation6 + $0x7c] sm:$0xf]
        %v2024 = vld [vmem:[%s10] sm:$0x1]
        %v2026 = vperm.slane %v2024, 0
        %v2060 = vunpack.c.l.b16 %v1992
        %v2061 = vunpack.c.l.b16 %v1993
        %v2062 = vunpack.c.l.b16 %v1994
        %v2063 = vunpack.c.l.b16 %v1995
        %v2064 = vunpack.c.l.b16 %v1996
        %v2065 = vunpack.c.l.b16 %v1997
        %v2066 = vunpack.c.l.b16 %v1998
        %v2067 = vunpack.c.l.b16 %v1999
        %v2068 = vunpack.c.l.b16 %v2000
        %v2069 = vunpack.c.l.b16 %v2001
        %v2070 = vunpack.c.l.b16 %v2002
        %v2071 = vunpack.c.l.b16 %v2003
        %v2072 = vunpack.c.l.b16 %v2004
        %v2073 = vunpack.c.l.b16 %v2005
        %v2074 = vunpack.c.l.b16 %v2006
        %v2075 = vunpack.c.l.b16 %v2007
        %v2076 = vunpack.c.l.b16 %v2008
        %v2077 = vunpack.c.l.b16 %v2009
        %v2078 = vunpack.c.l.b16 %v2010
        %v2079 = vunpack.c.l.b16 %v2011
        %v2080 = vunpack.c.l.b16 %v2012
        %v2081 = vunpack.c.l.b16 %v2013
        %v2082 = vunpack.c.l.b16 %v2014
        %v2083 = vunpack.c.l.b16 %v2015
        %v2084 = vunpack.c.l.b16 %v2016
        %v2085 = vunpack.c.l.b16 %v2017
        %v2086 = vunpack.c.l.b16 %v2018
        %v2087 = vunpack.c.l.b16 %v2019
        %v2088 = vunpack.c.l.b16 %v2020
        %v2089 = vunpack.c.l.b16 %v2021
        %v2090 = vunpack.c.l.b16 %v2022
        %v2091 = vunpack.c.l.b16 %v2023
        %v2092 = vpack.c.b16 %v2061, %v2060
        %v2093 = vpack.c.b16 %v2063, %v2062
        %v2094 = vpack.c.b16 %v2065, %v2064
        %v2095 = vpack.c.b16 %v2067, %v2066
        %v2096 = vpack.c.b16 %v2069, %v2068
        %v2097 = vpack.c.b16 %v2071, %v2070
        %v2098 = vpack.c.b16 %v2073, %v2072
        %v2099 = vpack.c.b16 %v2075, %v2074
        %v2100 = vpack.c.b16 %v2077, %v2076
        %v2101 = vpack.c.b16 %v2079, %v2078
        %v2102 = vpack.c.b16 %v2081, %v2080
        %v2103 = vpack.c.b16 %v2083, %v2082
        %v2104 = vpack.c.b16 %v2085, %v2084
        %v2105 = vpack.c.b16 %v2087, %v2086
        %v2106 = vpack.c.b16 %v2089, %v2088
        %v2107 = vpack.c.b16 %v2091, %v2090
        %2124 = vmatpush.bf16.msra.mxu0 %v2099
        %2125 = vmatpush.bf16.msra.mxu0 %v2098
        %2126 = vmatpush.bf16.msra.mxu0 %v2097
        %2127 = vmatpush.bf16.msra.mxu0 %v2096
        %2128 = vmatpush.bf16.msra.mxu0 %v2095
        %2129 = vmatpush.bf16.msra.mxu0 %v2094
        %2130 = vmatpush.bf16.msra.mxu0 %v2093
        %2131 = vmatpush.bf16.msra.mxu0 %v2092
        %2132 = vmatmul.bf16.gmra.mxu0 %v1976
        %v2133 = vpop.f32.mrf.mxu0
        %v2134 = vadd.f32 %v2026, %v2133
        %v2135 = vpop.f32.mrf.mxu0
        %v2136 = vadd.f32 %v2026, %v2135
        %2137 = vmatmul.bf16.gmra.mxu0 %v1978
        %v2138 = vpop.f32.mrf.mxu0
        %v2139 = vadd.f32 %v2026, %v2138
        %v2140 = vpop.f32.mrf.mxu0
        %v2141 = vadd.f32 %v2026, %v2140
        %2142 = vmatmul.bf16.gmra.mxu0 %v1980
        %v2143 = vpop.f32.mrf.mxu0
        %v2144 = vadd.f32 %v2026, %v2143
        %v2145 = vpop.f32.mrf.mxu0
        %v2146 = vadd.f32 %v2026, %v2145
        %2147 = vmatmul.bf16.gmra.mxu0 %v1982
        %v2148 = vpop.f32.mrf.mxu0
        %v2149 = vadd.f32 %v2026, %v2148
        %v2150 = vpop.f32.mrf.mxu0
        %v2151 = vadd.f32 %v2026, %v2150
        %2152 = vmatmul.bf16.gmra.mxu0 %v1984
        %v2153 = vpop.f32.mrf.mxu0
        %v2154 = vadd.f32 %v2026, %v2153
        %v2155 = vpop.f32.mrf.mxu0
        %v2156 = vadd.f32 %v2026, %v2155
        %2157 = vmatmul.bf16.gmra.mxu0 %v1986
        %v2158 = vpop.f32.mrf.mxu0
        %v2159 = vadd.f32 %v2026, %v2158
        %v2160 = vpop.f32.mrf.mxu0
        %v2161 = vadd.f32 %v2026, %v2160
        %2162 = vmatmul.bf16.gmra.mxu0 %v1988
        %v2163 = vpop.f32.mrf.mxu0
        %v2164 = vadd.f32 %v2026, %v2163
        %v2165 = vpop.f32.mrf.mxu0
        %v2166 = vadd.f32 %v2026, %v2165
        %2167 = vmatmul.bf16.gmra.mxu0 %v1990
        %v2168 = vpop.f32.mrf.mxu0
        %v2169 = vadd.f32 %v2026, %v2168
        %v2170 = vpop.f32.mrf.mxu0
        %v2171 = vadd.f32 %v2026, %v2170
        %2172 = vdwg.mxu0
        %2173 = vmatpush.bf16.msra.mxu0 %v2107
        %2174 = vmatpush.bf16.msra.mxu0 %v2106
        %2175 = vmatpush.bf16.msra.mxu0 %v2105
        %2176 = vmatpush.bf16.msra.mxu0 %v2104
        %2177 = vmatpush.bf16.msra.mxu0 %v2103
        %2178 = vmatpush.bf16.msra.mxu0 %v2102
        %2179 = vmatpush.bf16.msra.mxu0 %v2101
        %2180 = vmatpush.bf16.msra.mxu0 %v2100
        %2181 = vmatmul.bf16.gmra.mxu0 %v1977
        %v2182 = vpop.f32.mrf.mxu0
        %v2183 = vadd.f32 %v2134, %v2182
        %v2184 = vpop.f32.mrf.mxu0
        %v2185 = vadd.f32 %v2136, %v2184
        %2186 = vmatmul.bf16.gmra.mxu0 %v1979
        %v2187 = vpop.f32.mrf.mxu0
        %v2188 = vadd.f32 %v2139, %v2187
        %v2189 = vpop.f32.mrf.mxu0
        %v2190 = vadd.f32 %v2141, %v2189
        %2191 = vmatmul.bf16.gmra.mxu0 %v1981
        %v2192 = vpop.f32.mrf.mxu0
        %v2193 = vadd.f32 %v2144, %v2192
        %v2194 = vpop.f32.mrf.mxu0
        %v2195 = vadd.f32 %v2146, %v2194
        %2196 = vmatmul.bf16.gmra.mxu0 %v1983
        %v2197 = vpop.f32.mrf.mxu0
        %v2198 = vadd.f32 %v2149, %v2197
        %v2199 = vpop.f32.mrf.mxu0
        %v2200 = vadd.f32 %v2151, %v2199
        %2201 = vmatmul.bf16.gmra.mxu0 %v1985
        %v2202 = vpop.f32.mrf.mxu0
        %v2203 = vadd.f32 %v2154, %v2202
        %v2204 = vpop.f32.mrf.mxu0
        %v2205 = vadd.f32 %v2156, %v2204
        %2206 = vmatmul.bf16.gmra.mxu0 %v1987
        %v2207 = vpop.f32.mrf.mxu0
        %v2208 = vadd.f32 %v2159, %v2207
        %v2209 = vpop.f32.mrf.mxu0
        %v2210 = vadd.f32 %v2161, %v2209
        %2211 = vmatmul.bf16.gmra.mxu0 %v1989
        %v2212 = vpop.f32.mrf.mxu0
        %v2213 = vadd.f32 %v2164, %v2212
        %v2214 = vpop.f32.mrf.mxu0
        %v2215 = vadd.f32 %v2166, %v2214
        %2216 = vmatmul.bf16.gmra.mxu0 %v1991
        %v2217 = vpop.f32.mrf.mxu0
        %v2218 = vadd.f32 %v2169, %v2217
        %v2219 = vpop.f32.mrf.mxu0
        %v2220 = vadd.f32 %v2171, %v2219
        %2221 = vdwg.mxu0
        %2222 = vst [vmem:[%s438] sm:$0xff] %v2183
        %2223 = vst [vmem:[%s438 + $0x8] sm:$0xff] %v2185
        %2224 = vst [vmem:[%s438 + $0x10] sm:$0xff] %v2188
        %2225 = vst [vmem:[%s438 + $0x18] sm:$0xff] %v2190
        %2226 = vst [vmem:[%s438 + $0x20] sm:$0xff] %v2193
        %2227 = vst [vmem:[%s438 + $0x28] sm:$0xff] %v2195
        %2228 = vst [vmem:[%s438 + $0x30] sm:$0xff] %v2198
        %2229 = vst [vmem:[%s438 + $0x38] sm:$0xff] %v2200
        %2230 = vst [vmem:[%s438 + $0x40] sm:$0xff] %v2203
        %2231 = vst [vmem:[%s438 + $0x48] sm:$0xff] %v2205
        %2232 = vst [vmem:[%s438 + $0x50] sm:$0xff] %v2208
        %2233 = vst [vmem:[%s438 + $0x58] sm:$0xff] %v2210
        %2234 = vst [vmem:[%s438 + $0x60] sm:$0xff] %v2213
        %2235 = vst [vmem:[%s438 + $0x68] sm:$0xff] %v2215
        %2236 = vst [vmem:[%s438 + $0x70] sm:$0xff] %v2218
        %2237 = vst [vmem:[%s438 + $0x78] sm:$0xff] %v2220
        %s2238 = smul.u32 16, %s24
        %p2239 = scmp.lt.s32.totalorder %s2238, 31
        %s2240 = scalar_select %p2239, %s2238, 31
        %s2241 = smul.addr %s2240, 8
        %s2242 = scalar_lea.vmem %s11, %s2241
        // Predicated region
        $region77: #{base_network_forward.1} parent=63 // pred_check
          %p2243 = pneg %p278
        $region78: #{base_network_forward.1} parent=63 // pred_check_branch
          %2245 = sbr.rel (%p2243) target = $region80
        $region79: #{base_network_forward.1} parent=63 // pred_region
          %s2246 = smul.u32 16, %s24
        $region80: #{base_network_forward.1} parent=63 // pred_fallthru
          _
      $region64: #{base_network_forward.1} parent=5 // pred_fallthru
        _
      %p2247 = scmp.le.s32.totalorder 2, %s19
      // Predicated region
      $region81: #{base_network_forward.1} parent=5 // pred_check
        %p2248 = pneg %p2247
      $region82: #{base_network_forward.1} parent=5 // pred_check_branch
        %2250 = sbr.rel (%p2248) target = $region84
      $region83: #{base_network_forward.1} parent=5 // pred_region
        %s2251 = ssub.s32 %s19, 2
        // Predicated region
        $region85: #{base_network_forward.1} parent=83 // pred_check
          %p2252 = pneg %p284
        $region86: #{base_network_forward.1} parent=83 // pred_check_branch
          %2254 = sbr.rel (%p2252) target = $region88
        $region87: #{base_network_forward.1} parent=83 // pred_region
          %s2255 = smul.u32 16, %s25
          %p2256 = scmp.lt.s32.totalorder %s2255, 31
          %s2257 = scalar_select %p2256, %s2255, 31
          %s2258 = smul.addr %s2257, 8
          %s2259 = scalar_lea.vmem %s11, %s2258
        $region88: #{base_network_forward.1} parent=83 // pred_fallthru
          _
      $region84: #{base_network_forward.1} parent=5 // pred_fallthru
        _
    $region6: #{base_network_forward.1} parent=1 // loop_footer
      %s23 = sadd.s32 1, %s19
    $region7: #{base_network_forward.1} parent=1 // loop_footer_branch
      %18 = sbr.rel target = $region3
    $region8: #{base_network_forward.1} parent=1 // loop_exit
      _
    %2260 = vsyncpa [#allocation3], 1
    %s2261 = scalar_lea.sflag [#allocation3], 1
    %2262 = vsyncpa %s2261, 1
    %2263 = vsyncpa [#allocation5], 1

</llo_original>
